<compile_context>
chip_gen: v5e
topology: v5e:2x2
jax: 0.10.0
libtpu: 0.0.40
codegen_flags: <defaults>
</compile_context>

<pallas_src>
import functools

import jax
import jax.numpy as jnp
import numpy as np
from jax import lax
from jax.experimental import pallas as pl
from jax.experimental.pallas import tpu as pltpu


# ----------------------------------------------------------------------------
# Pallas kernel: one batch element per grid step.  Writes 5 partial sums into
# its own (8, 128) output row (sublane 0, lanes 0..4):
#   lane 0: sum |Fuse - max(vis, ir)|                 (3*H*W elems / image)
#   lane 1: sum |gx(Fuse) - max(gx(vis), gx(ir))|
#   lane 2: sum |gy(Fuse) - max(gy(vis), gy(ir))|
#   lane 3: sum |Cr(Fuse) - Cr(vis)|                  (H*W elems / image)
#   lane 4: sum |Cb(Fuse) - Cb(vis)|
# ----------------------------------------------------------------------------
def _fusion_loss_kernel(vis_ref, ir_ref, outp_ref, mask_ref, sums_ref, pad_ref,
                        *, H, W):
    f32 = jnp.float32

    # Zero the padded scratch once; the 1-pixel border stays zero, the interior
    # is overwritten for every plane below.
    pad_ref[...] = jnp.zeros_like(pad_ref)

    m = mask_ref[0, 0].astype(f32)                       # (H, W), reused for R/G/B

    def sobel(plane):
        # 3x3 cross-correlation with zero padding=1 (== F.conv2d(padding=1)).
        pad_ref[1:1 + H, 1:1 + W] = plane

        def tap(dr, dc):
            return pad_ref[1 + dr:1 + dr + H, 1 + dc:1 + dc + W]

        tl = tap(-1, -1); tc = tap(-1, 0); tr = tap(-1, 1)
        ml = tap(0, -1);                   mr = tap(0, 1)
        bl = tap(1, -1);  bc = tap(1, 0);  br = tap(1, 1)
        # kernelx = [[-1,0,1],[-2,0,2],[-1,0,1]]
        gx = (tr - tl) + 2.0 * (mr - ml) + (br - bl)
        # kernely = [[1,2,1],[0,0,0],[-1,-2,-1]]
        gy = (tl + 2.0 * tc + tr) - (bl + 2.0 * bc + br)
        return gx, gy

    # VPU slab accumulators (reduced once at the very end).
    acc_int = jnp.zeros((H, W), f32)
    acc_gx = jnp.zeros((H, W), f32)
    acc_gy = jnp.zeros((H, W), f32)
    y_f = jnp.zeros((H, W), f32)
    y_v = jnp.zeros((H, W), f32)
    f_R = v_R = f_B = v_B = None
    y_w = (0.299, 0.587, 0.114)

    # One RGB channel at a time: bounded live intermediates, slices taken
    # directly from the refs (free), upcast to f32 only inside the kernel.
    for c in range(3):
        v = vis_ref[0, c].astype(f32)                    # (H, W)
        r = ir_ref[0, c].astype(f32)
        f = outp_ref[0, c].astype(f32) * m               # Fuse = output * Mask

        acc_int = acc_int + jnp.abs(f - jnp.maximum(v, r))

        fgx, fgy = sobel(f)
        vgx, vgy = sobel(v)
        igx, igy = sobel(r)
        acc_gx = acc_gx + jnp.abs(fgx - jnp.maximum(vgx, igx))
        acc_gy = acc_gy + jnp.abs(fgy - jnp.maximum(vgy, igy))

        y_f = y_f + y_w[c] * f
        y_v = y_v + y_w[c] * v
        if c == 0:
            f_R, v_R = f, v
        if c == 2:
            f_B, v_B = f, v

    # YCrCb color terms (Cr/Cb of Fuse vs. visible).
    cr_f = (f_R - y_f) * 0.713 + 0.5
    cr_v = (v_R - y_v) * 0.713 + 0.5
    cb_f = (f_B - y_f) * 0.564 + 0.5
    cb_v = (v_B - y_v) * 0.564 + 0.5
    d_cr = jnp.abs(cr_f - cr_v)
    d_cb = jnp.abs(cb_f - cb_v)

    # 5 final cross-lane reductions per grid step (was 11).
    s_int = jnp.sum(acc_int, keepdims=True)              # (1, 1)
    s_gx = jnp.sum(acc_gx, keepdims=True)
    s_gy = jnp.sum(acc_gy, keepdims=True)
    s_cr = jnp.sum(d_cr, keepdims=True)
    s_cb = jnp.sum(d_cb, keepdims=True)

    # Pack into a lane-dense (8, 128) block; full-vreg unmasked store into this
    # batch element's own output row (no read-modify-write, no race).
    lane = lax.broadcasted_iota(jnp.int32, (8, 128), 1)
    packed = (jnp.where(lane == 0, s_int, 0.0)
              + jnp.where(lane == 1, s_gx, 0.0)
              + jnp.where(lane == 2, s_gy, 0.0)
              + jnp.where(lane == 3, s_cr, 0.0)
              + jnp.where(lane == 4, s_cb, 0.0))
    sums_ref[0] = packed


# ----------------------------------------------------------------------------
# wrapper
# ----------------------------------------------------------------------------
def fusion_loss_pallas(input_vis, input_ir, output, mask):
    B, C, H, W = output.shape
    assert C == 3
    assert input_vis.shape == (B, 3, H, W) and input_ir.shape == (B, 3, H, W)
    assert mask.shape == (B, 1, H, W)

    kernel = functools.partial(_fusion_loss_kernel, H=H, W=W)
    sums = pl.pallas_call(
        kernel,
        out_shape=jax.ShapeDtypeStruct((B, 8, 128), jnp.float32),
        grid_spec=pltpu.PrefetchScalarGridSpec(
            num_scalar_prefetch=0,
            grid=(B,),
            in_specs=[
                pl.BlockSpec((1, 3, H, W), lambda b: (b, 0, 0, 0)),   # vis
                pl.BlockSpec((1, 3, H, W), lambda b: (b, 0, 0, 0)),   # ir
                pl.BlockSpec((1, 3, H, W), lambda b: (b, 0, 0, 0)),   # output
                pl.BlockSpec((1, 1, H, W), lambda b: (b, 0, 0, 0)),   # mask
            ],
            out_specs=pl.BlockSpec((1, 8, 128), lambda b: (b, 0, 0)),
            scratch_shapes=[pltpu.VMEM((H + 2, W + 2), jnp.float32)],
        ),
        compiler_params=pltpu.CompilerParams(
            dimension_semantics=("parallel",)),   # per-batch output slots -> safe
    )(input_vis, input_ir, output, mask)

    s = jnp.sum(sums[:, 0, :], axis=0)            # (128,) totals over the batch
    n3 = B * 3 * H * W                            # elements for Fuse / gradient means
    n1 = B * H * W                                # elements for Cr / Cb means

    max_int_loss = s[0] / n3
    gradient_loss = 0.5 * s[1] / n3 + 0.5 * s[2] / n3
    color_loss = s[4] / n1 + s[3] / n1            # L1(Cb) + L1(Cr)
    return 0.5 * max_int_loss + 0.2 * gradient_loss + 1.0 * color_loss


# ----------------------------------------------------------------------------
# pure-JAX reference (mirrors the PyTorch module)
# ----------------------------------------------------------------------------
def fusion_loss_reference(input_vis, input_ir, output, mask):
    fuse = output.astype(jnp.float32) * mask.astype(jnp.float32)
    vis = input_vis.astype(jnp.float32)
    ir = input_ir.astype(jnp.float32)

    def rgb2crcb(x):
        R, G, B = x[:, 0], x[:, 1], x[:, 2]
        Y = 0.299 * R + 0.587 * G + 0.114 * B
        return (R - Y) * 0.713 + 0.5, (B - Y) * 0.564 + 0.5

    def sobel(x):
        Hh, Ww = x.shape[2], x.shape[3]
        xp = jnp.pad(x, ((0, 0), (0, 0), (1, 1), (1, 1)))

        def s(dr, dc):
            return xp[:, :, 1 + dr:1 + dr + Hh, 1 + dc:1 + dc + Ww]
        gx = (s(-1, 1) - s(-1, -1)) + 2 * (s(0, 1) - s(0, -1)) + (s(1, 1) - s(1, -1))
        gy = (s(-1, -1) + 2 * s(-1, 0) + s(-1, 1)) - (s(1, -1) + 2 * s(1, 0) + s(1, 1))
        return gx, gy

    cr_f, cb_f = rgb2crcb(fuse)
    cr_v, cb_v = rgb2crcb(vis)
    fgx, fgy = sobel(fuse)
    vgx, vgy = sobel(vis)
    igx, igy = sobel(ir)

    l1 = lambda a, b: jnp.mean(jnp.abs(a - b))
    max_int_loss = l1(fuse, jnp.maximum(vis, ir))
    gradient_loss = 0.5 * l1(fgx, jnp.maximum(vgx, igx)) + 0.5 * l1(fgy, jnp.maximum(vgy, igy))
    color_loss = l1(cb_f, cb_v) + l1(cr_f, cr_v)
    return 0.5 * max_int_loss + 0.2 * gradient_loss + 1.0 * color_loss


# ----------------------------------------------------------------------------
if __name__ == "__main__":
    B, H, W = 2, 16, 16
    key = jax.random.PRNGKey(0)
    k0, k1, k2, k3 = jax.random.split(key, 4)

    input_vis = jax.random.uniform(k0, (B, 3, H, W), dtype=jnp.float32)
    input_ir = jax.random.uniform(k1, (B, 3, H, W), dtype=jnp.float32)
    output = jax.random.uniform(k2, (B, 3, H, W), dtype=jnp.float32)
    Mask = jax.random.bernoulli(k3, 0.7, (B, 1, H, W)).astype(jnp.float32)

    loss = fusion_loss_pallas(input_vis, input_ir, output, Mask)
    jax.block_until_ready(loss)

    ref = fusion_loss_reference(input_vis, input_ir, output, Mask)

    assert np.isfinite(float(loss)), loss
    assert np.allclose(float(loss), float(ref), rtol=1e-4, atol=1e-5), (float(loss), float(ref))

    print("KERNEL_OK")
</pallas_src>

<mosaic_0001>
module attributes {stable_mosaic.version = 11 : i64} {
  func.func @_fusion_loss_kernel(%arg0: i32, %arg1: memref<1x3x16x16xf32, #tpu.memory_space<vmem>>, %arg2: memref<1x3x16x16xf32, #tpu.memory_space<vmem>>, %arg3: memref<1x3x16x16xf32, #tpu.memory_space<vmem>>, %arg4: memref<1x1x16x16xf32, #tpu.memory_space<vmem>>, %arg5: memref<1x8x128xf32, #tpu.memory_space<vmem>>, %arg6: memref<18x18xf32, #tpu.memory_space<vmem>>) attributes {dimension_semantics = [#tpu.dimension_semantics<parallel>], iteration_bounds = array<i64: 2>, scalar_prefetch = 0 : i64, scratch_operands = 1 : i64, tpu.core_type = #tpu.core_type<tc>, window_params = [{transform_indices = @transform_0, window_bounds = array<i64: 1, 3, 16, 16>}, {transform_indices = @transform_1, window_bounds = array<i64: 1, 3, 16, 16>}, {transform_indices = @transform_2, window_bounds = array<i64: 1, 3, 16, 16>}, {transform_indices = @transform_3, window_bounds = array<i64: 1, 1, 16, 16>}, {transform_indices = @transform_4, window_bounds = array<i64: 1, 8, 128>}]} {
    %cst = arith.constant 0.000000e+00 : f32
    %0 = vector.broadcast %cst : f32 to vector<18x18xf32>
    %c0 = arith.constant 0 : index
    %c0_0 = arith.constant 0 : index
    %1 = vector.load %arg6[%c0, %c0_0] : memref<18x18xf32, #tpu.memory_space<vmem>>, vector<18x18xf32>
    tpu.vector_store %arg6[%c0, %c0_0], %0 {strides = array<i32>} : memref<18x18xf32, #tpu.memory_space<vmem>>, vector<18x18xf32>,
    %c0_1 = arith.constant 0 : index
    %c0_2 = arith.constant 0 : index
    %c0_3 = arith.constant 0 : index
    %c0_4 = arith.constant 0 : index
    %2 = vector.load %arg4[%c0_1, %c0_2, %c0_3, %c0_4] : memref<1x1x16x16xf32, #tpu.memory_space<vmem>>, vector<1x1x16x16xf32>
    %3 = vector.shape_cast %2 : vector<1x1x16x16xf32> to vector<16x16xf32>
    %cst_5 = arith.constant 0.000000e+00 : f32
    %4 = vector.broadcast %cst_5 : f32 to vector<16x16xf32>
    %cst_6 = arith.constant 0.000000e+00 : f32
    %5 = vector.broadcast %cst_6 : f32 to vector<16x16xf32>
    %cst_7 = arith.constant 0.000000e+00 : f32
    %6 = vector.broadcast %cst_7 : f32 to vector<16x16xf32>
    %cst_8 = arith.constant 0.000000e+00 : f32
    %7 = vector.broadcast %cst_8 : f32 to vector<16x16xf32>
    %cst_9 = arith.constant 0.000000e+00 : f32
    %8 = vector.broadcast %cst_9 : f32 to vector<16x16xf32>
    %c0_10 = arith.constant 0 : index
    %c0_11 = arith.constant 0 : index
    %c0_12 = arith.constant 0 : index
    %c0_13 = arith.constant 0 : index
    %9 = vector.load %arg1[%c0_10, %c0_11, %c0_12, %c0_13] : memref<1x3x16x16xf32, #tpu.memory_space<vmem>>, vector<1x1x16x16xf32>
    %10 = vector.shape_cast %9 : vector<1x1x16x16xf32> to vector<16x16xf32>
    %c0_14 = arith.constant 0 : index
    %c0_15 = arith.constant 0 : index
    %c0_16 = arith.constant 0 : index
    %c0_17 = arith.constant 0 : index
    %11 = vector.load %arg2[%c0_14, %c0_15, %c0_16, %c0_17] : memref<1x3x16x16xf32, #tpu.memory_space<vmem>>, vector<1x1x16x16xf32>
    %12 = vector.shape_cast %11 : vector<1x1x16x16xf32> to vector<16x16xf32>
    %c0_18 = arith.constant 0 : index
    %c0_19 = arith.constant 0 : index
    %c0_20 = arith.constant 0 : index
    %c0_21 = arith.constant 0 : index
    %13 = vector.load %arg3[%c0_18, %c0_19, %c0_20, %c0_21] : memref<1x3x16x16xf32, #tpu.memory_space<vmem>>, vector<1x1x16x16xf32>
    %14 = vector.shape_cast %13 : vector<1x1x16x16xf32> to vector<16x16xf32>
    %15 = arith.mulf %14, %3 : vector<16x16xf32>
    %16 = arith.maximumf %10, %12 : vector<16x16xf32>
    %17 = arith.subf %15, %16 : vector<16x16xf32>
    %18 = math.absf %17 : vector<16x16xf32>
    %19 = arith.addf %4, %18 : vector<16x16xf32>
    %c1 = arith.constant 1 : index
    %c1_22 = arith.constant 1 : index
    %20 = vector.load %arg6[%c1, %c1_22] : memref<18x18xf32, #tpu.memory_space<vmem>>, vector<16x16xf32>
    tpu.vector_store %arg6[%c1, %c1_22], %15 {strides = array<i32>} : memref<18x18xf32, #tpu.memory_space<vmem>>, vector<16x16xf32>,
    %c0_23 = arith.constant 0 : index
    %c0_24 = arith.constant 0 : index
    %21 = vector.load %arg6[%c0_23, %c0_24] : memref<18x18xf32, #tpu.memory_space<vmem>>, vector<16x16xf32>
    %c0_25 = arith.constant 0 : index
    %c1_26 = arith.constant 1 : index
    %22 = vector.load %arg6[%c0_25, %c1_26] : memref<18x18xf32, #tpu.memory_space<vmem>>, vector<16x16xf32>
    %c0_27 = arith.constant 0 : index
    %c2 = arith.constant 2 : index
    %23 = vector.load %arg6[%c0_27, %c2] : memref<18x18xf32, #tpu.memory_space<vmem>>, vector<16x16xf32>
    %c1_28 = arith.constant 1 : index
    %c0_29 = arith.constant 0 : index
    %24 = vector.load %arg6[%c1_28, %c0_29] : memref<18x18xf32, #tpu.memory_space<vmem>>, vector<16x16xf32>
    %c1_30 = arith.constant 1 : index
    %c2_31 = arith.constant 2 : index
    %25 = vector.load %arg6[%c1_30, %c2_31] : memref<18x18xf32, #tpu.memory_space<vmem>>, vector<16x16xf32>
    %c2_32 = arith.constant 2 : index
    %c0_33 = arith.constant 0 : index
    %26 = vector.load %arg6[%c2_32, %c0_33] : memref<18x18xf32, #tpu.memory_space<vmem>>, vector<16x16xf32>
    %c2_34 = arith.constant 2 : index
    %c1_35 = arith.constant 1 : index
    %27 = vector.load %arg6[%c2_34, %c1_35] : memref<18x18xf32, #tpu.memory_space<vmem>>, vector<16x16xf32>
    %c2_36 = arith.constant 2 : index
    %c2_37 = arith.constant 2 : index
    %28 = vector.load %arg6[%c2_36, %c2_37] : memref<18x18xf32, #tpu.memory_space<vmem>>, vector<16x16xf32>
    %29 = arith.subf %23, %21 : vector<16x16xf32>
    %30 = arith.subf %25, %24 : vector<16x16xf32>
    %cst_38 = arith.constant 2.000000e+00 : f32
    %31 = vector.broadcast %cst_38 : f32 to vector<16x16xf32>
    %32 = arith.mulf %31, %30 : vector<16x16xf32>
    %33 = arith.addf %29, %32 : vector<16x16xf32>
    %34 = arith.subf %28, %26 : vector<16x16xf32>
    %35 = arith.addf %33, %34 : vector<16x16xf32>
    %cst_39 = arith.constant 2.000000e+00 : f32
    %36 = vector.broadcast %cst_39 : f32 to vector<16x16xf32>
    %37 = arith.mulf %36, %22 : vector<16x16xf32>
    %38 = arith.addf %21, %37 : vector<16x16xf32>
    %39 = arith.addf %38, %23 : vector<16x16xf32>
    %cst_40 = arith.constant 2.000000e+00 : f32
    %40 = vector.broadcast %cst_40 : f32 to vector<16x16xf32>
    %41 = arith.mulf %40, %27 : vector<16x16xf32>
    %42 = arith.addf %26, %41 : vector<16x16xf32>
    %43 = arith.addf %42, %28 : vector<16x16xf32>
    %44 = arith.subf %39, %43 : vector<16x16xf32>
    %c1_41 = arith.constant 1 : index
    %c1_42 = arith.constant 1 : index
    %45 = vector.load %arg6[%c1_41, %c1_42] : memref<18x18xf32, #tpu.memory_space<vmem>>, vector<16x16xf32>
    tpu.vector_store %arg6[%c1_41, %c1_42], %10 {strides = array<i32>} : memref<18x18xf32, #tpu.memory_space<vmem>>, vector<16x16xf32>,
    %c0_43 = arith.constant 0 : index
    %c0_44 = arith.constant 0 : index
    %46 = vector.load %arg6[%c0_43, %c0_44] : memref<18x18xf32, #tpu.memory_space<vmem>>, vector<16x16xf32>
    %c0_45 = arith.constant 0 : index
    %c1_46 = arith.constant 1 : index
    %47 = vector.load %arg6[%c0_45, %c1_46] : memref<18x18xf32, #tpu.memory_space<vmem>>, vector<16x16xf32>
    %c0_47 = arith.constant 0 : index
    %c2_48 = arith.constant 2 : index
    %48 = vector.load %arg6[%c0_47, %c2_48] : memref<18x18xf32, #tpu.memory_space<vmem>>, vector<16x16xf32>
    %c1_49 = arith.constant 1 : index
    %c0_50 = arith.constant 0 : index
    %49 = vector.load %arg6[%c1_49, %c0_50] : memref<18x18xf32, #tpu.memory_space<vmem>>, vector<16x16xf32>
    %c1_51 = arith.constant 1 : index
    %c2_52 = arith.constant 2 : index
    %50 = vector.load %arg6[%c1_51, %c2_52] : memref<18x18xf32, #tpu.memory_space<vmem>>, vector<16x16xf32>
    %c2_53 = arith.constant 2 : index
    %c0_54 = arith.constant 0 : index
    %51 = vector.load %arg6[%c2_53, %c0_54] : memref<18x18xf32, #tpu.memory_space<vmem>>, vector<16x16xf32>
    %c2_55 = arith.constant 2 : index
    %c1_56 = arith.constant 1 : index
    %52 = vector.load %arg6[%c2_55, %c1_56] : memref<18x18xf32, #tpu.memory_space<vmem>>, vector<16x16xf32>
    %c2_57 = arith.constant 2 : index
    %c2_58 = arith.constant 2 : index
    %53 = vector.load %arg6[%c2_57, %c2_58] : memref<18x18xf32, #tpu.memory_space<vmem>>, vector<16x16xf32>
    %54 = arith.subf %48, %46 : vector<16x16xf32>
    %55 = arith.subf %50, %49 : vector<16x16xf32>
    %cst_59 = arith.constant 2.000000e+00 : f32
    %56 = vector.broadcast %cst_59 : f32 to vector<16x16xf32>
    %57 = arith.mulf %56, %55 : vector<16x16xf32>
    %58 = arith.addf %54, %57 : vector<16x16xf32>
    %59 = arith.subf %53, %51 : vector<16x16xf32>
    %60 = arith.addf %58, %59 : vector<16x16xf32>
    %cst_60 = arith.constant 2.000000e+00 : f32
    %61 = vector.broadcast %cst_60 : f32 to vector<16x16xf32>
    %62 = arith.mulf %61, %47 : vector<16x16xf32>
    %63 = arith.addf %46, %62 : vector<16x16xf32>
    %64 = arith.addf %63, %48 : vector<16x16xf32>
    %cst_61 = arith.constant 2.000000e+00 : f32
    %65 = vector.broadcast %cst_61 : f32 to vector<16x16xf32>
    %66 = arith.mulf %65, %52 : vector<16x16xf32>
    %67 = arith.addf %51, %66 : vector<16x16xf32>
    %68 = arith.addf %67, %53 : vector<16x16xf32>
    %69 = arith.subf %64, %68 : vector<16x16xf32>
    %c1_62 = arith.constant 1 : index
    %c1_63 = arith.constant 1 : index
    %70 = vector.load %arg6[%c1_62, %c1_63] : memref<18x18xf32, #tpu.memory_space<vmem>>, vector<16x16xf32>
    tpu.vector_store %arg6[%c1_62, %c1_63], %12 {strides = array<i32>} : memref<18x18xf32, #tpu.memory_space<vmem>>, vector<16x16xf32>,
    %c0_64 = arith.constant 0 : index
    %c0_65 = arith.constant 0 : index
    %71 = vector.load %arg6[%c0_64, %c0_65] : memref<18x18xf32, #tpu.memory_space<vmem>>, vector<16x16xf32>
    %c0_66 = arith.constant 0 : index
    %c1_67 = arith.constant 1 : index
    %72 = vector.load %arg6[%c0_66, %c1_67] : memref<18x18xf32, #tpu.memory_space<vmem>>, vector<16x16xf32>
    %c0_68 = arith.constant 0 : index
    %c2_69 = arith.constant 2 : index
    %73 = vector.load %arg6[%c0_68, %c2_69] : memref<18x18xf32, #tpu.memory_space<vmem>>, vector<16x16xf32>
    %c1_70 = arith.constant 1 : index
    %c0_71 = arith.constant 0 : index
    %74 = vector.load %arg6[%c1_70, %c0_71] : memref<18x18xf32, #tpu.memory_space<vmem>>, vector<16x16xf32>
    %c1_72 = arith.constant 1 : index
    %c2_73 = arith.constant 2 : index
    %75 = vector.load %arg6[%c1_72, %c2_73] : memref<18x18xf32, #tpu.memory_space<vmem>>, vector<16x16xf32>
    %c2_74 = arith.constant 2 : index
    %c0_75 = arith.constant 0 : index
    %76 = vector.load %arg6[%c2_74, %c0_75] : memref<18x18xf32, #tpu.memory_space<vmem>>, vector<16x16xf32>
    %c2_76 = arith.constant 2 : index
    %c1_77 = arith.constant 1 : index
    %77 = vector.load %arg6[%c2_76, %c1_77] : memref<18x18xf32, #tpu.memory_space<vmem>>, vector<16x16xf32>
    %c2_78 = arith.constant 2 : index
    %c2_79 = arith.constant 2 : index
    %78 = vector.load %arg6[%c2_78, %c2_79] : memref<18x18xf32, #tpu.memory_space<vmem>>, vector<16x16xf32>
    %79 = arith.subf %73, %71 : vector<16x16xf32>
    %80 = arith.subf %75, %74 : vector<16x16xf32>
    %cst_80 = arith.constant 2.000000e+00 : f32
    %81 = vector.broadcast %cst_80 : f32 to vector<16x16xf32>
    %82 = arith.mulf %81, %80 : vector<16x16xf32>
    %83 = arith.addf %79, %82 : vector<16x16xf32>
    %84 = arith.subf %78, %76 : vector<16x16xf32>
    %85 = arith.addf %83, %84 : vector<16x16xf32>
    %cst_81 = arith.constant 2.000000e+00 : f32
    %86 = vector.broadcast %cst_81 : f32 to vector<16x16xf32>
    %87 = arith.mulf %86, %72 : vector<16x16xf32>
    %88 = arith.addf %71, %87 : vector<16x16xf32>
    %89 = arith.addf %88, %73 : vector<16x16xf32>
    %cst_82 = arith.constant 2.000000e+00 : f32
    %90 = vector.broadcast %cst_82 : f32 to vector<16x16xf32>
    %91 = arith.mulf %90, %77 : vector<16x16xf32>
    %92 = arith.addf %76, %91 : vector<16x16xf32>
    %93 = arith.addf %92, %78 : vector<16x16xf32>
    %94 = arith.subf %89, %93 : vector<16x16xf32>
    %95 = arith.maximumf %60, %85 : vector<16x16xf32>
    %96 = arith.subf %35, %95 : vector<16x16xf32>
    %97 = math.absf %96 : vector<16x16xf32>
    %98 = arith.addf %5, %97 : vector<16x16xf32>
    %99 = arith.maximumf %69, %94 : vector<16x16xf32>
    %100 = arith.subf %44, %99 : vector<16x16xf32>
    %101 = math.absf %100 : vector<16x16xf32>
    %102 = arith.addf %6, %101 : vector<16x16xf32>
    %cst_83 = arith.constant 2.990000e-01 : f32
    %103 = vector.broadcast %cst_83 : f32 to vector<16x16xf32>
    %104 = arith.mulf %103, %15 : vector<16x16xf32>
    %105 = arith.addf %7, %104 : vector<16x16xf32>
    %cst_84 = arith.constant 2.990000e-01 : f32
    %106 = vector.broadcast %cst_84 : f32 to vector<16x16xf32>
    %107 = arith.mulf %106, %10 : vector<16x16xf32>
    %108 = arith.addf %8, %107 : vector<16x16xf32>
    %c0_85 = arith.constant 0 : index
    %c1_86 = arith.constant 1 : index
    %c0_87 = arith.constant 0 : index
    %c0_88 = arith.constant 0 : index
    %109 = vector.load %arg1[%c0_85, %c1_86, %c0_87, %c0_88] : memref<1x3x16x16xf32, #tpu.memory_space<vmem>>, vector<1x1x16x16xf32>
    %110 = vector.shape_cast %109 : vector<1x1x16x16xf32> to vector<16x16xf32>
    %c0_89 = arith.constant 0 : index
    %c1_90 = arith.constant 1 : index
    %c0_91 = arith.constant 0 : index
    %c0_92 = arith.constant 0 : index
    %111 = vector.load %arg2[%c0_89, %c1_90, %c0_91, %c0_92] : memref<1x3x16x16xf32, #tpu.memory_space<vmem>>, vector<1x1x16x16xf32>
    %112 = vector.shape_cast %111 : vector<1x1x16x16xf32> to vector<16x16xf32>
    %c0_93 = arith.constant 0 : index
    %c1_94 = arith.constant 1 : index
    %c0_95 = arith.constant 0 : index
    %c0_96 = arith.constant 0 : index
    %113 = vector.load %arg3[%c0_93, %c1_94, %c0_95, %c0_96] : memref<1x3x16x16xf32, #tpu.memory_space<vmem>>, vector<1x1x16x16xf32>
    %114 = vector.shape_cast %113 : vector<1x1x16x16xf32> to vector<16x16xf32>
    %115 = arith.mulf %114, %3 : vector<16x16xf32>
    %116 = arith.maximumf %110, %112 : vector<16x16xf32>
    %117 = arith.subf %115, %116 : vector<16x16xf32>
    %118 = math.absf %117 : vector<16x16xf32>
    %119 = arith.addf %19, %118 : vector<16x16xf32>
    %c1_97 = arith.constant 1 : index
    %c1_98 = arith.constant 1 : index
    %120 = vector.load %arg6[%c1_97, %c1_98] : memref<18x18xf32, #tpu.memory_space<vmem>>, vector<16x16xf32>
    tpu.vector_store %arg6[%c1_97, %c1_98], %115 {strides = array<i32>} : memref<18x18xf32, #tpu.memory_space<vmem>>, vector<16x16xf32>,
    %c0_99 = arith.constant 0 : index
    %c0_100 = arith.constant 0 : index
    %121 = vector.load %arg6[%c0_99, %c0_100] : memref<18x18xf32, #tpu.memory_space<vmem>>, vector<16x16xf32>
    %c0_101 = arith.constant 0 : index
    %c1_102 = arith.constant 1 : index
    %122 = vector.load %arg6[%c0_101, %c1_102] : memref<18x18xf32, #tpu.memory_space<vmem>>, vector<16x16xf32>
    %c0_103 = arith.constant 0 : index
    %c2_104 = arith.constant 2 : index
    %123 = vector.load %arg6[%c0_103, %c2_104] : memref<18x18xf32, #tpu.memory_space<vmem>>, vector<16x16xf32>
    %c1_105 = arith.constant 1 : index
    %c0_106 = arith.constant 0 : index
    %124 = vector.load %arg6[%c1_105, %c0_106] : memref<18x18xf32, #tpu.memory_space<vmem>>, vector<16x16xf32>
    %c1_107 = arith.constant 1 : index
    %c2_108 = arith.constant 2 : index
    %125 = vector.load %arg6[%c1_107, %c2_108] : memref<18x18xf32, #tpu.memory_space<vmem>>, vector<16x16xf32>
    %c2_109 = arith.constant 2 : index
    %c0_110 = arith.constant 0 : index
    %126 = vector.load %arg6[%c2_109, %c0_110] : memref<18x18xf32, #tpu.memory_space<vmem>>, vector<16x16xf32>
    %c2_111 = arith.constant 2 : index
    %c1_112 = arith.constant 1 : index
    %127 = vector.load %arg6[%c2_111, %c1_112] : memref<18x18xf32, #tpu.memory_space<vmem>>, vector<16x16xf32>
    %c2_113 = arith.constant 2 : index
    %c2_114 = arith.constant 2 : index
    %128 = vector.load %arg6[%c2_113, %c2_114] : memref<18x18xf32, #tpu.memory_space<vmem>>, vector<16x16xf32>
    %129 = arith.subf %123, %121 : vector<16x16xf32>
    %130 = arith.subf %125, %124 : vector<16x16xf32>
    %cst_115 = arith.constant 2.000000e+00 : f32
    %131 = vector.broadcast %cst_115 : f32 to vector<16x16xf32>
    %132 = arith.mulf %131, %130 : vector<16x16xf32>
    %133 = arith.addf %129, %132 : vector<16x16xf32>
    %134 = arith.subf %128, %126 : vector<16x16xf32>
    %135 = arith.addf %133, %134 : vector<16x16xf32>
    %cst_116 = arith.constant 2.000000e+00 : f32
    %136 = vector.broadcast %cst_116 : f32 to vector<16x16xf32>
    %137 = arith.mulf %136, %122 : vector<16x16xf32>
    %138 = arith.addf %121, %137 : vector<16x16xf32>
    %139 = arith.addf %138, %123 : vector<16x16xf32>
    %cst_117 = arith.constant 2.000000e+00 : f32
    %140 = vector.broadcast %cst_117 : f32 to vector<16x16xf32>
    %141 = arith.mulf %140, %127 : vector<16x16xf32>
    %142 = arith.addf %126, %141 : vector<16x16xf32>
    %143 = arith.addf %142, %128 : vector<16x16xf32>
    %144 = arith.subf %139, %143 : vector<16x16xf32>
    %c1_118 = arith.constant 1 : index
    %c1_119 = arith.constant 1 : index
    %145 = vector.load %arg6[%c1_118, %c1_119] : memref<18x18xf32, #tpu.memory_space<vmem>>, vector<16x16xf32>
    tpu.vector_store %arg6[%c1_118, %c1_119], %110 {strides = array<i32>} : memref<18x18xf32, #tpu.memory_space<vmem>>, vector<16x16xf32>,
    %c0_120 = arith.constant 0 : index
    %c0_121 = arith.constant 0 : index
    %146 = vector.load %arg6[%c0_120, %c0_121] : memref<18x18xf32, #tpu.memory_space<vmem>>, vector<16x16xf32>
    %c0_122 = arith.constant 0 : index
    %c1_123 = arith.constant 1 : index
    %147 = vector.load %arg6[%c0_122, %c1_123] : memref<18x18xf32, #tpu.memory_space<vmem>>, vector<16x16xf32>
    %c0_124 = arith.constant 0 : index
    %c2_125 = arith.constant 2 : index
    %148 = vector.load %arg6[%c0_124, %c2_125] : memref<18x18xf32, #tpu.memory_space<vmem>>, vector<16x16xf32>
    %c1_126 = arith.constant 1 : index
    %c0_127 = arith.constant 0 : index
    %149 = vector.load %arg6[%c1_126, %c0_127] : memref<18x18xf32, #tpu.memory_space<vmem>>, vector<16x16xf32>
    %c1_128 = arith.constant 1 : index
    %c2_129 = arith.constant 2 : index
    %150 = vector.load %arg6[%c1_128, %c2_129] : memref<18x18xf32, #tpu.memory_space<vmem>>, vector<16x16xf32>
    %c2_130 = arith.constant 2 : index
    %c0_131 = arith.constant 0 : index
    %151 = vector.load %arg6[%c2_130, %c0_131] : memref<18x18xf32, #tpu.memory_space<vmem>>, vector<16x16xf32>
    %c2_132 = arith.constant 2 : index
    %c1_133 = arith.constant 1 : index
    %152 = vector.load %arg6[%c2_132, %c1_133] : memref<18x18xf32, #tpu.memory_space<vmem>>, vector<16x16xf32>
    %c2_134 = arith.constant 2 : index
    %c2_135 = arith.constant 2 : index
    %153 = vector.load %arg6[%c2_134, %c2_135] : memref<18x18xf32, #tpu.memory_space<vmem>>, vector<16x16xf32>
    %154 = arith.subf %148, %146 : vector<16x16xf32>
    %155 = arith.subf %150, %149 : vector<16x16xf32>
    %cst_136 = arith.constant 2.000000e+00 : f32
    %156 = vector.broadcast %cst_136 : f32 to vector<16x16xf32>
    %157 = arith.mulf %156, %155 : vector<16x16xf32>
    %158 = arith.addf %154, %157 : vector<16x16xf32>
    %159 = arith.subf %153, %151 : vector<16x16xf32>
    %160 = arith.addf %158, %159 : vector<16x16xf32>
    %cst_137 = arith.constant 2.000000e+00 : f32
    %161 = vector.broadcast %cst_137 : f32 to vector<16x16xf32>
    %162 = arith.mulf %161, %147 : vector<16x16xf32>
    %163 = arith.addf %146, %162 : vector<16x16xf32>
    %164 = arith.addf %163, %148 : vector<16x16xf32>
    %cst_138 = arith.constant 2.000000e+00 : f32
    %165 = vector.broadcast %cst_138 : f32 to vector<16x16xf32>
    %166 = arith.mulf %165, %152 : vector<16x16xf32>
    %167 = arith.addf %151, %166 : vector<16x16xf32>
    %168 = arith.addf %167, %153 : vector<16x16xf32>
    %169 = arith.subf %164, %168 : vector<16x16xf32>
    %c1_139 = arith.constant 1 : index
    %c1_140 = arith.constant 1 : index
    %170 = vector.load %arg6[%c1_139, %c1_140] : memref<18x18xf32, #tpu.memory_space<vmem>>, vector<16x16xf32>
    tpu.vector_store %arg6[%c1_139, %c1_140], %112 {strides = array<i32>} : memref<18x18xf32, #tpu.memory_space<vmem>>, vector<16x16xf32>,
    %c0_141 = arith.constant 0 : index
    %c0_142 = arith.constant 0 : index
    %171 = vector.load %arg6[%c0_141, %c0_142] : memref<18x18xf32, #tpu.memory_space<vmem>>, vector<16x16xf32>
    %c0_143 = arith.constant 0 : index
    %c1_144 = arith.constant 1 : index
    %172 = vector.load %arg6[%c0_143, %c1_144] : memref<18x18xf32, #tpu.memory_space<vmem>>, vector<16x16xf32>
    %c0_145 = arith.constant 0 : index
    %c2_146 = arith.constant 2 : index
    %173 = vector.load %arg6[%c0_145, %c2_146] : memref<18x18xf32, #tpu.memory_space<vmem>>, vector<16x16xf32>
    %c1_147 = arith.constant 1 : index
    %c0_148 = arith.constant 0 : index
    %174 = vector.load %arg6[%c1_147, %c0_148] : memref<18x18xf32, #tpu.memory_space<vmem>>, vector<16x16xf32>
    %c1_149 = arith.constant 1 : index
    %c2_150 = arith.constant 2 : index
    %175 = vector.load %arg6[%c1_149, %c2_150] : memref<18x18xf32, #tpu.memory_space<vmem>>, vector<16x16xf32>
    %c2_151 = arith.constant 2 : index
    %c0_152 = arith.constant 0 : index
    %176 = vector.load %arg6[%c2_151, %c0_152] : memref<18x18xf32, #tpu.memory_space<vmem>>, vector<16x16xf32>
    %c2_153 = arith.constant 2 : index
    %c1_154 = arith.constant 1 : index
    %177 = vector.load %arg6[%c2_153, %c1_154] : memref<18x18xf32, #tpu.memory_space<vmem>>, vector<16x16xf32>
    %c2_155 = arith.constant 2 : index
    %c2_156 = arith.constant 2 : index
    %178 = vector.load %arg6[%c2_155, %c2_156] : memref<18x18xf32, #tpu.memory_space<vmem>>, vector<16x16xf32>
    %179 = arith.subf %173, %171 : vector<16x16xf32>
    %180 = arith.subf %175, %174 : vector<16x16xf32>
    %cst_157 = arith.constant 2.000000e+00 : f32
    %181 = vector.broadcast %cst_157 : f32 to vector<16x16xf32>
    %182 = arith.mulf %181, %180 : vector<16x16xf32>
    %183 = arith.addf %179, %182 : vector<16x16xf32>
    %184 = arith.subf %178, %176 : vector<16x16xf32>
    %185 = arith.addf %183, %184 : vector<16x16xf32>
    %cst_158 = arith.constant 2.000000e+00 : f32
    %186 = vector.broadcast %cst_158 : f32 to vector<16x16xf32>
    %187 = arith.mulf %186, %172 : vector<16x16xf32>
    %188 = arith.addf %171, %187 : vector<16x16xf32>
    %189 = arith.addf %188, %173 : vector<16x16xf32>
    %cst_159 = arith.constant 2.000000e+00 : f32
    %190 = vector.broadcast %cst_159 : f32 to vector<16x16xf32>
    %191 = arith.mulf %190, %177 : vector<16x16xf32>
    %192 = arith.addf %176, %191 : vector<16x16xf32>
    %193 = arith.addf %192, %178 : vector<16x16xf32>
    %194 = arith.subf %189, %193 : vector<16x16xf32>
    %195 = arith.maximumf %160, %185 : vector<16x16xf32>
    %196 = arith.subf %135, %195 : vector<16x16xf32>
    %197 = math.absf %196 : vector<16x16xf32>
    %198 = arith.addf %98, %197 : vector<16x16xf32>
    %199 = arith.maximumf %169, %194 : vector<16x16xf32>
    %200 = arith.subf %144, %199 : vector<16x16xf32>
    %201 = math.absf %200 : vector<16x16xf32>
    %202 = arith.addf %102, %201 : vector<16x16xf32>
    %cst_160 = arith.constant 5.870000e-01 : f32
    %203 = vector.broadcast %cst_160 : f32 to vector<16x16xf32>
    %204 = arith.mulf %203, %115 : vector<16x16xf32>
    %205 = arith.addf %105, %204 : vector<16x16xf32>
    %cst_161 = arith.constant 5.870000e-01 : f32
    %206 = vector.broadcast %cst_161 : f32 to vector<16x16xf32>
    %207 = arith.mulf %206, %110 : vector<16x16xf32>
    %208 = arith.addf %108, %207 : vector<16x16xf32>
    %c0_162 = arith.constant 0 : index
    %c2_163 = arith.constant 2 : index
    %c0_164 = arith.constant 0 : index
    %c0_165 = arith.constant 0 : index
    %209 = vector.load %arg1[%c0_162, %c2_163, %c0_164, %c0_165] : memref<1x3x16x16xf32, #tpu.memory_space<vmem>>, vector<1x1x16x16xf32>
    %210 = vector.shape_cast %209 : vector<1x1x16x16xf32> to vector<16x16xf32>
    %c0_166 = arith.constant 0 : index
    %c2_167 = arith.constant 2 : index
    %c0_168 = arith.constant 0 : index
    %c0_169 = arith.constant 0 : index
    %211 = vector.load %arg2[%c0_166, %c2_167, %c0_168, %c0_169] : memref<1x3x16x16xf32, #tpu.memory_space<vmem>>, vector<1x1x16x16xf32>
    %212 = vector.shape_cast %211 : vector<1x1x16x16xf32> to vector<16x16xf32>
    %c0_170 = arith.constant 0 : index
    %c2_171 = arith.constant 2 : index
    %c0_172 = arith.constant 0 : index
    %c0_173 = arith.constant 0 : index
    %213 = vector.load %arg3[%c0_170, %c2_171, %c0_172, %c0_173] : memref<1x3x16x16xf32, #tpu.memory_space<vmem>>, vector<1x1x16x16xf32>
    %214 = vector.shape_cast %213 : vector<1x1x16x16xf32> to vector<16x16xf32>
    %215 = arith.mulf %214, %3 : vector<16x16xf32>
    %216 = arith.maximumf %210, %212 : vector<16x16xf32>
    %217 = arith.subf %215, %216 : vector<16x16xf32>
    %218 = math.absf %217 : vector<16x16xf32>
    %219 = arith.addf %119, %218 : vector<16x16xf32>
    %c1_174 = arith.constant 1 : index
    %c1_175 = arith.constant 1 : index
    %220 = vector.load %arg6[%c1_174, %c1_175] : memref<18x18xf32, #tpu.memory_space<vmem>>, vector<16x16xf32>
    tpu.vector_store %arg6[%c1_174, %c1_175], %215 {strides = array<i32>} : memref<18x18xf32, #tpu.memory_space<vmem>>, vector<16x16xf32>,
    %c0_176 = arith.constant 0 : index
    %c0_177 = arith.constant 0 : index
    %221 = vector.load %arg6[%c0_176, %c0_177] : memref<18x18xf32, #tpu.memory_space<vmem>>, vector<16x16xf32>
    %c0_178 = arith.constant 0 : index
    %c1_179 = arith.constant 1 : index
    %222 = vector.load %arg6[%c0_178, %c1_179] : memref<18x18xf32, #tpu.memory_space<vmem>>, vector<16x16xf32>
    %c0_180 = arith.constant 0 : index
    %c2_181 = arith.constant 2 : index
    %223 = vector.load %arg6[%c0_180, %c2_181] : memref<18x18xf32, #tpu.memory_space<vmem>>, vector<16x16xf32>
    %c1_182 = arith.constant 1 : index
    %c0_183 = arith.constant 0 : index
    %224 = vector.load %arg6[%c1_182, %c0_183] : memref<18x18xf32, #tpu.memory_space<vmem>>, vector<16x16xf32>
    %c1_184 = arith.constant 1 : index
    %c2_185 = arith.constant 2 : index
    %225 = vector.load %arg6[%c1_184, %c2_185] : memref<18x18xf32, #tpu.memory_space<vmem>>, vector<16x16xf32>
    %c2_186 = arith.constant 2 : index
    %c0_187 = arith.constant 0 : index
    %226 = vector.load %arg6[%c2_186, %c0_187] : memref<18x18xf32, #tpu.memory_space<vmem>>, vector<16x16xf32>
    %c2_188 = arith.constant 2 : index
    %c1_189 = arith.constant 1 : index
    %227 = vector.load %arg6[%c2_188, %c1_189] : memref<18x18xf32, #tpu.memory_space<vmem>>, vector<16x16xf32>
    %c2_190 = arith.constant 2 : index
    %c2_191 = arith.constant 2 : index
    %228 = vector.load %arg6[%c2_190, %c2_191] : memref<18x18xf32, #tpu.memory_space<vmem>>, vector<16x16xf32>
    %229 = arith.subf %223, %221 : vector<16x16xf32>
    %230 = arith.subf %225, %224 : vector<16x16xf32>
    %cst_192 = arith.constant 2.000000e+00 : f32
    %231 = vector.broadcast %cst_192 : f32 to vector<16x16xf32>
    %232 = arith.mulf %231, %230 : vector<16x16xf32>
    %233 = arith.addf %229, %232 : vector<16x16xf32>
    %234 = arith.subf %228, %226 : vector<16x16xf32>
    %235 = arith.addf %233, %234 : vector<16x16xf32>
    %cst_193 = arith.constant 2.000000e+00 : f32
    %236 = vector.broadcast %cst_193 : f32 to vector<16x16xf32>
    %237 = arith.mulf %236, %222 : vector<16x16xf32>
    %238 = arith.addf %221, %237 : vector<16x16xf32>
    %239 = arith.addf %238, %223 : vector<16x16xf32>
    %cst_194 = arith.constant 2.000000e+00 : f32
    %240 = vector.broadcast %cst_194 : f32 to vector<16x16xf32>
    %241 = arith.mulf %240, %227 : vector<16x16xf32>
    %242 = arith.addf %226, %241 : vector<16x16xf32>
    %243 = arith.addf %242, %228 : vector<16x16xf32>
    %244 = arith.subf %239, %243 : vector<16x16xf32>
    %c1_195 = arith.constant 1 : index
    %c1_196 = arith.constant 1 : index
    %245 = vector.load %arg6[%c1_195, %c1_196] : memref<18x18xf32, #tpu.memory_space<vmem>>, vector<16x16xf32>
    tpu.vector_store %arg6[%c1_195, %c1_196], %210 {strides = array<i32>} : memref<18x18xf32, #tpu.memory_space<vmem>>, vector<16x16xf32>,
    %c0_197 = arith.constant 0 : index
    %c0_198 = arith.constant 0 : index
    %246 = vector.load %arg6[%c0_197, %c0_198] : memref<18x18xf32, #tpu.memory_space<vmem>>, vector<16x16xf32>
    %c0_199 = arith.constant 0 : index
    %c1_200 = arith.constant 1 : index
    %247 = vector.load %arg6[%c0_199, %c1_200] : memref<18x18xf32, #tpu.memory_space<vmem>>, vector<16x16xf32>
    %c0_201 = arith.constant 0 : index
    %c2_202 = arith.constant 2 : index
    %248 = vector.load %arg6[%c0_201, %c2_202] : memref<18x18xf32, #tpu.memory_space<vmem>>, vector<16x16xf32>
    %c1_203 = arith.constant 1 : index
    %c0_204 = arith.constant 0 : index
    %249 = vector.load %arg6[%c1_203, %c0_204] : memref<18x18xf32, #tpu.memory_space<vmem>>, vector<16x16xf32>
    %c1_205 = arith.constant 1 : index
    %c2_206 = arith.constant 2 : index
    %250 = vector.load %arg6[%c1_205, %c2_206] : memref<18x18xf32, #tpu.memory_space<vmem>>, vector<16x16xf32>
    %c2_207 = arith.constant 2 : index
    %c0_208 = arith.constant 0 : index
    %251 = vector.load %arg6[%c2_207, %c0_208] : memref<18x18xf32, #tpu.memory_space<vmem>>, vector<16x16xf32>
    %c2_209 = arith.constant 2 : index
    %c1_210 = arith.constant 1 : index
    %252 = vector.load %arg6[%c2_209, %c1_210] : memref<18x18xf32, #tpu.memory_space<vmem>>, vector<16x16xf32>
    %c2_211 = arith.constant 2 : index
    %c2_212 = arith.constant 2 : index
    %253 = vector.load %arg6[%c2_211, %c2_212] : memref<18x18xf32, #tpu.memory_space<vmem>>, vector<16x16xf32>
    %254 = arith.subf %248, %246 : vector<16x16xf32>
    %255 = arith.subf %250, %249 : vector<16x16xf32>
    %cst_213 = arith.constant 2.000000e+00 : f32
    %256 = vector.broadcast %cst_213 : f32 to vector<16x16xf32>
    %257 = arith.mulf %256, %255 : vector<16x16xf32>
    %258 = arith.addf %254, %257 : vector<16x16xf32>
    %259 = arith.subf %253, %251 : vector<16x16xf32>
    %260 = arith.addf %258, %259 : vector<16x16xf32>
    %cst_214 = arith.constant 2.000000e+00 : f32
    %261 = vector.broadcast %cst_214 : f32 to vector<16x16xf32>
    %262 = arith.mulf %261, %247 : vector<16x16xf32>
    %263 = arith.addf %246, %262 : vector<16x16xf32>
    %264 = arith.addf %263, %248 : vector<16x16xf32>
    %cst_215 = arith.constant 2.000000e+00 : f32
    %265 = vector.broadcast %cst_215 : f32 to vector<16x16xf32>
    %266 = arith.mulf %265, %252 : vector<16x16xf32>
    %267 = arith.addf %251, %266 : vector<16x16xf32>
    %268 = arith.addf %267, %253 : vector<16x16xf32>
    %269 = arith.subf %264, %268 : vector<16x16xf32>
    %c1_216 = arith.constant 1 : index
    %c1_217 = arith.constant 1 : index
    %270 = vector.load %arg6[%c1_216, %c1_217] : memref<18x18xf32, #tpu.memory_space<vmem>>, vector<16x16xf32>
    tpu.vector_store %arg6[%c1_216, %c1_217], %212 {strides = array<i32>} : memref<18x18xf32, #tpu.memory_space<vmem>>, vector<16x16xf32>,
    %c0_218 = arith.constant 0 : index
    %c0_219 = arith.constant 0 : index
    %271 = vector.load %arg6[%c0_218, %c0_219] : memref<18x18xf32, #tpu.memory_space<vmem>>, vector<16x16xf32>
    %c0_220 = arith.constant 0 : index
    %c1_221 = arith.constant 1 : index
    %272 = vector.load %arg6[%c0_220, %c1_221] : memref<18x18xf32, #tpu.memory_space<vmem>>, vector<16x16xf32>
    %c0_222 = arith.constant 0 : index
    %c2_223 = arith.constant 2 : index
    %273 = vector.load %arg6[%c0_222, %c2_223] : memref<18x18xf32, #tpu.memory_space<vmem>>, vector<16x16xf32>
    %c1_224 = arith.constant 1 : index
    %c0_225 = arith.constant 0 : index
    %274 = vector.load %arg6[%c1_224, %c0_225] : memref<18x18xf32, #tpu.memory_space<vmem>>, vector<16x16xf32>
    %c1_226 = arith.constant 1 : index
    %c2_227 = arith.constant 2 : index
    %275 = vector.load %arg6[%c1_226, %c2_227] : memref<18x18xf32, #tpu.memory_space<vmem>>, vector<16x16xf32>
    %c2_228 = arith.constant 2 : index
    %c0_229 = arith.constant 0 : index
    %276 = vector.load %arg6[%c2_228, %c0_229] : memref<18x18xf32, #tpu.memory_space<vmem>>, vector<16x16xf32>
    %c2_230 = arith.constant 2 : index
    %c1_231 = arith.constant 1 : index
    %277 = vector.load %arg6[%c2_230, %c1_231] : memref<18x18xf32, #tpu.memory_space<vmem>>, vector<16x16xf32>
    %c2_232 = arith.constant 2 : index
    %c2_233 = arith.constant 2 : index
    %278 = vector.load %arg6[%c2_232, %c2_233] : memref<18x18xf32, #tpu.memory_space<vmem>>, vector<16x16xf32>
    %279 = arith.subf %273, %271 : vector<16x16xf32>
    %280 = arith.subf %275, %274 : vector<16x16xf32>
    %cst_234 = arith.constant 2.000000e+00 : f32
    %281 = vector.broadcast %cst_234 : f32 to vector<16x16xf32>
    %282 = arith.mulf %281, %280 : vector<16x16xf32>
    %283 = arith.addf %279, %282 : vector<16x16xf32>
    %284 = arith.subf %278, %276 : vector<16x16xf32>
    %285 = arith.addf %283, %284 : vector<16x16xf32>
    %cst_235 = arith.constant 2.000000e+00 : f32
    %286 = vector.broadcast %cst_235 : f32 to vector<16x16xf32>
    %287 = arith.mulf %286, %272 : vector<16x16xf32>
    %288 = arith.addf %271, %287 : vector<16x16xf32>
    %289 = arith.addf %288, %273 : vector<16x16xf32>
    %cst_236 = arith.constant 2.000000e+00 : f32
    %290 = vector.broadcast %cst_236 : f32 to vector<16x16xf32>
    %291 = arith.mulf %290, %277 : vector<16x16xf32>
    %292 = arith.addf %276, %291 : vector<16x16xf32>
    %293 = arith.addf %292, %278 : vector<16x16xf32>
    %294 = arith.subf %289, %293 : vector<16x16xf32>
    %295 = arith.maximumf %260, %285 : vector<16x16xf32>
    %296 = arith.subf %235, %295 : vector<16x16xf32>
    %297 = math.absf %296 : vector<16x16xf32>
    %298 = arith.addf %198, %297 : vector<16x16xf32>
    %299 = arith.maximumf %269, %294 : vector<16x16xf32>
    %300 = arith.subf %244, %299 : vector<16x16xf32>
    %301 = math.absf %300 : vector<16x16xf32>
    %302 = arith.addf %202, %301 : vector<16x16xf32>
    %cst_237 = arith.constant 1.140000e-01 : f32
    %303 = vector.broadcast %cst_237 : f32 to vector<16x16xf32>
    %304 = arith.mulf %303, %215 : vector<16x16xf32>
    %305 = arith.addf %205, %304 : vector<16x16xf32>
    %cst_238 = arith.constant 1.140000e-01 : f32
    %306 = vector.broadcast %cst_238 : f32 to vector<16x16xf32>
    %307 = arith.mulf %306, %210 : vector<16x16xf32>
    %308 = arith.addf %208, %307 : vector<16x16xf32>
    %309 = arith.subf %15, %305 : vector<16x16xf32>
    %cst_239 = arith.constant 0.712999999 : f32
    %310 = vector.broadcast %cst_239 : f32 to vector<16x16xf32>
    %311 = arith.mulf %309, %310 : vector<16x16xf32>
    %cst_240 = arith.constant 5.000000e-01 : f32
    %312 = vector.broadcast %cst_240 : f32 to vector<16x16xf32>
    %313 = arith.addf %311, %312 : vector<16x16xf32>
    %314 = arith.subf %10, %308 : vector<16x16xf32>
    %cst_241 = arith.constant 0.712999999 : f32
    %315 = vector.broadcast %cst_241 : f32 to vector<16x16xf32>
    %316 = arith.mulf %314, %315 : vector<16x16xf32>
    %cst_242 = arith.constant 5.000000e-01 : f32
    %317 = vector.broadcast %cst_242 : f32 to vector<16x16xf32>
    %318 = arith.addf %316, %317 : vector<16x16xf32>
    %319 = arith.subf %215, %305 : vector<16x16xf32>
    %cst_243 = arith.constant 5.640000e-01 : f32
    %320 = vector.broadcast %cst_243 : f32 to vector<16x16xf32>
    %321 = arith.mulf %319, %320 : vector<16x16xf32>
    %cst_244 = arith.constant 5.000000e-01 : f32
    %322 = vector.broadcast %cst_244 : f32 to vector<16x16xf32>
    %323 = arith.addf %321, %322 : vector<16x16xf32>
    %324 = arith.subf %210, %308 : vector<16x16xf32>
    %cst_245 = arith.constant 5.640000e-01 : f32
    %325 = vector.broadcast %cst_245 : f32 to vector<16x16xf32>
    %326 = arith.mulf %324, %325 : vector<16x16xf32>
    %cst_246 = arith.constant 5.000000e-01 : f32
    %327 = vector.broadcast %cst_246 : f32 to vector<16x16xf32>
    %328 = arith.addf %326, %327 : vector<16x16xf32>
    %329 = arith.subf %313, %318 : vector<16x16xf32>
    %330 = math.absf %329 : vector<16x16xf32>
    %331 = arith.subf %323, %328 : vector<16x16xf32>
    %332 = math.absf %331 : vector<16x16xf32>
    %333 = vector.shape_cast %219 : vector<16x16xf32> to vector<1x16x16xf32>
    %cst_247 = arith.constant dense<0.000000e+00> : vector<1xf32>
    %334 = vector.multi_reduction <add>, %333, %cst_247 [1, 2] : vector<1x16x16xf32> to vector<1xf32>
    %335 = vector.shape_cast %334 : vector<1xf32> to vector<1x1x1xf32>
    %336 = vector.extract %335[0, 0, 0] : f32 from vector<1x1x1xf32>
    %337 = vector.broadcast %336 : f32 to vector<1x1xf32>
    %338 = vector.shape_cast %298 : vector<16x16xf32> to vector<1x16x16xf32>
    %cst_248 = arith.constant dense<0.000000e+00> : vector<1xf32>
    %339 = vector.multi_reduction <add>, %338, %cst_248 [1, 2] : vector<1x16x16xf32> to vector<1xf32>
    %340 = vector.shape_cast %339 : vector<1xf32> to vector<1x1x1xf32>
    %341 = vector.extract %340[0, 0, 0] : f32 from vector<1x1x1xf32>
    %342 = vector.broadcast %341 : f32 to vector<1x1xf32>
    %343 = vector.shape_cast %302 : vector<16x16xf32> to vector<1x16x16xf32>
    %cst_249 = arith.constant dense<0.000000e+00> : vector<1xf32>
    %344 = vector.multi_reduction <add>, %343, %cst_249 [1, 2] : vector<1x16x16xf32> to vector<1xf32>
    %345 = vector.shape_cast %344 : vector<1xf32> to vector<1x1x1xf32>
    %346 = vector.extract %345[0, 0, 0] : f32 from vector<1x1x1xf32>
    %347 = vector.broadcast %346 : f32 to vector<1x1xf32>
    %348 = vector.shape_cast %330 : vector<16x16xf32> to vector<1x16x16xf32>
    %cst_250 = arith.constant dense<0.000000e+00> : vector<1xf32>
    %349 = vector.multi_reduction <add>, %348, %cst_250 [1, 2] : vector<1x16x16xf32> to vector<1xf32>
    %350 = vector.shape_cast %349 : vector<1xf32> to vector<1x1x1xf32>
    %351 = vector.extract %350[0, 0, 0] : f32 from vector<1x1x1xf32>
    %352 = vector.broadcast %351 : f32 to vector<1x1xf32>
    %353 = vector.shape_cast %332 : vector<16x16xf32> to vector<1x16x16xf32>
    %cst_251 = arith.constant dense<0.000000e+00> : vector<1xf32>
    %354 = vector.multi_reduction <add>, %353, %cst_251 [1, 2] : vector<1x16x16xf32> to vector<1xf32>
    %355 = vector.shape_cast %354 : vector<1xf32> to vector<1x1x1xf32>
    %356 = vector.extract %355[0, 0, 0] : f32 from vector<1x1x1xf32>
    %357 = vector.broadcast %356 : f32 to vector<1x1xf32>
    %358 = tpu.iota {dimensions = array<i32: 1>} : vector<8x128xi32>
    %c0_i32 = arith.constant 0 : i32
    %359 = vector.broadcast %c0_i32 : i32 to vector<8x128xi32>
    %360 = arith.cmpi eq, %358, %359 : vector<8x128xi32>
    %cst_252 = arith.constant 0.000000e+00 : f32
    %361 = vector.shape_cast %337 : vector<1x1xf32> to vector<1x1xf32>
    %362 = vector.broadcast %361 : vector<1x1xf32> to vector<8x128xf32>
    %363 = vector.broadcast %cst_252 : f32 to vector<8x128xf32>
    %364 = arith.select %360, %362, %363 : vector<8x128xi1>, vector<8x128xf32>
    %c1_i32 = arith.constant 1 : i32
    %365 = vector.broadcast %c1_i32 : i32 to vector<8x128xi32>
    %366 = arith.cmpi eq, %358, %365 : vector<8x128xi32>
    %cst_253 = arith.constant 0.000000e+00 : f32
    %367 = vector.shape_cast %342 : vector<1x1xf32> to vector<1x1xf32>
    %368 = vector.broadcast %367 : vector<1x1xf32> to vector<8x128xf32>
    %369 = vector.broadcast %cst_253 : f32 to vector<8x128xf32>
    %370 = arith.select %366, %368, %369 : vector<8x128xi1>, vector<8x128xf32>
    %371 = arith.addf %364, %370 : vector<8x128xf32>
    %c2_i32 = arith.constant 2 : i32
    %372 = vector.broadcast %c2_i32 : i32 to vector<8x128xi32>
    %373 = arith.cmpi eq, %358, %372 : vector<8x128xi32>
    %cst_254 = arith.constant 0.000000e+00 : f32
    %374 = vector.shape_cast %347 : vector<1x1xf32> to vector<1x1xf32>
    %375 = vector.broadcast %374 : vector<1x1xf32> to vector<8x128xf32>
    %376 = vector.broadcast %cst_254 : f32 to vector<8x128xf32>
    %377 = arith.select %373, %375, %376 : vector<8x128xi1>, vector<8x128xf32>
    %378 = arith.addf %371, %377 : vector<8x128xf32>
    %c3_i32 = arith.constant 3 : i32
    %379 = vector.broadcast %c3_i32 : i32 to vector<8x128xi32>
    %380 = arith.cmpi eq, %358, %379 : vector<8x128xi32>
    %cst_255 = arith.constant 0.000000e+00 : f32
    %381 = vector.shape_cast %352 : vector<1x1xf32> to vector<1x1xf32>
    %382 = vector.broadcast %381 : vector<1x1xf32> to vector<8x128xf32>
    %383 = vector.broadcast %cst_255 : f32 to vector<8x128xf32>
    %384 = arith.select %380, %382, %383 : vector<8x128xi1>, vector<8x128xf32>
    %385 = arith.addf %378, %384 : vector<8x128xf32>
    %c4_i32 = arith.constant 4 : i32
    %386 = vector.broadcast %c4_i32 : i32 to vector<8x128xi32>
    %387 = arith.cmpi eq, %358, %386 : vector<8x128xi32>
    %cst_256 = arith.constant 0.000000e+00 : f32
    %388 = vector.shape_cast %357 : vector<1x1xf32> to vector<1x1xf32>
    %389 = vector.broadcast %388 : vector<1x1xf32> to vector<8x128xf32>
    %390 = vector.broadcast %cst_256 : f32 to vector<8x128xf32>
    %391 = arith.select %387, %389, %390 : vector<8x128xi1>, vector<8x128xf32>
    %392 = arith.addf %385, %391 : vector<8x128xf32>
    %c0_257 = arith.constant 0 : index
    %c0_258 = arith.constant 0 : index
    %c0_259 = arith.constant 0 : index
    %393 = vector.load %arg5[%c0_257, %c0_258, %c0_259] : memref<1x8x128xf32, #tpu.memory_space<vmem>>, vector<1x8x128xf32>
    %394 = vector.shape_cast %393 : vector<1x8x128xf32> to vector<8x128xf32>
    %395 = vector.shape_cast %392 : vector<8x128xf32> to vector<1x8x128xf32>
    tpu.vector_store %arg5[%c0_257, %c0_258, %c0_259], %395 {strides = array<i32>} : memref<1x8x128xf32, #tpu.memory_space<vmem>>, vector<1x8x128xf32>,
    return
  }
  func.func @transform_0(%arg0: i32) -> (i32, i32, i32, i32) {
    %c0_i32 = arith.constant 0 : i32
    %c0_i32_0 = arith.constant 0 : i32
    %c0_i32_1 = arith.constant 0 : i32
    %c0_i32_2 = arith.constant 0 : i32
    return %arg0, %c0_i32, %c0_i32_0, %c0_i32_1 : i32, i32, i32, i32
  }
  func.func @transform_1(%arg0: i32) -> (i32, i32, i32, i32) {
    %c0_i32 = arith.constant 0 : i32
    %c0_i32_0 = arith.constant 0 : i32
    %c0_i32_1 = arith.constant 0 : i32
    %c0_i32_2 = arith.constant 0 : i32
    return %arg0, %c0_i32, %c0_i32_0, %c0_i32_1 : i32, i32, i32, i32
  }
  func.func @transform_2(%arg0: i32) -> (i32, i32, i32, i32) {
    %c0_i32 = arith.constant 0 : i32
    %c0_i32_0 = arith.constant 0 : i32
    %c0_i32_1 = arith.constant 0 : i32
    %c0_i32_2 = arith.constant 0 : i32
    return %arg0, %c0_i32, %c0_i32_0, %c0_i32_1 : i32, i32, i32, i32
  }
  func.func @transform_3(%arg0: i32) -> (i32, i32, i32, i32) {
    %c0_i32 = arith.constant 0 : i32
    %c0_i32_0 = arith.constant 0 : i32
    %c0_i32_1 = arith.constant 0 : i32
    %c0_i32_2 = arith.constant 0 : i32
    return %arg0, %c0_i32, %c0_i32_0, %c0_i32_1 : i32, i32, i32, i32
  }
  func.func @transform_4(%arg0: i32) -> (i32, i32, i32) {
    %c0_i32 = arith.constant 0 : i32
    %c0_i32_0 = arith.constant 0 : i32
    %c0_i32_1 = arith.constant 0 : i32
    return %arg0, %c0_i32, %c0_i32_0 : i32, i32, i32
  }
}

</mosaic_0001>

<llo_original>
// kernel: tpu_custom_call.1
$region0: #{tpu_custom_call.1}
  #allocation0 [shape = 'u32[]', space=smem, size = 0x4, offset = 0x4, fixed_abs, tag = 'smem constant byte address 0x4 - core index']
  #allocation1 [shape = 'u32[72,128]{1,0:T(1,128)}', space=vmem, size = 0x9000, scoped, tag = 'internal scratch']
  #allocation2 [shape = 'f32[18,18]{1,0:T(8,128)}', space=vmem, size = 0x3000, scoped, tag = 'scratch operand']
  %s0 = inlined_call_operand.hbm [shape: f32[2,3,16,16], index: 0, kind: input, shape index: {}]
  %s1 = inlined_call_operand.hbm [shape: f32[2,3,16,16], index: 1, kind: input, shape index: {}]
  %s2 = inlined_call_operand.hbm [shape: f32[2,3,16,16], index: 2, kind: input, shape index: {}]
  %s3 = inlined_call_operand.hbm [shape: f32[2,1,16,16], index: 3, kind: input, shape index: {}]
  %s4 = inlined_call_operand.hbm [shape: f32[2,8,128], index: 4, kind: output, shape index: {}]
  %s5 = sld [smem:[#allocation0]]
  $region65: #{tpu_custom_call.1} parent=0
    _
  %s7 = ssub.s32 1, %s5
  %s8 = scalar_select 0, %s7, %s5
  $region1: #{tpu_custom_call.1} parent=0
    #allocation3 [shape = 'u8[49152]{0}', space=vmem, size = 0xc000, scoped, tag = 'input window, operand 0']
    #allocation4 [shape = 's32[2]{0}', space=sflag, size = 0x8, scoped, tag = 'scoped memory for tpu_custom_call.1']
    #allocation5 [shape = 's32[2]{0}', space=sflag, size = 0x8, scoped, tag = 'scoped memory for tpu_custom_call.1']
    #allocation6 [shape = 'u8[49152]{0}', space=vmem, size = 0xc000, scoped, tag = 'input window, operand 1']
    #allocation7 [shape = 's32[2]{0}', space=sflag, size = 0x8, scoped, tag = 'scoped memory for tpu_custom_call.1']
    #allocation8 [shape = 'u8[49152]{0}', space=vmem, size = 0xc000, scoped, tag = 'input window, operand 2']
    #allocation9 [shape = 'u8[16384]{0}', space=vmem, size = 0x4000, scoped, tag = 'input window, operand 3']
    #allocation10 [shape = 's32[2]{0}', space=sflag, size = 0x8, scoped, tag = 'scoped memory for tpu_custom_call.1']
    #allocation11 [shape = 'u8[8192]{0}', space=vmem, size = 0x2000, scoped, tag = 'output window, operand 0']
    %9 = vsyncpa [#allocation4], 0
    %s10 = scalar_lea.sflag [#allocation4], 1
    %11 = vsyncpa %s10, 0
    %12 = vsyncpa [#allocation7], 0
    %s13 = scalar_lea.sflag [#allocation7], 1
    %14 = vsyncpa %s13, 0
    %15 = vsyncpa [#allocation10], 0
    %s16 = scalar_lea.sflag [#allocation10], 1
    %17 = vsyncpa %s16, 0
    %18 = vsyncpa [#allocation5], 0
    %s19 = scalar_lea.sflag [#allocation5], 1
    %20 = vsyncpa %s19, 0
    loop: start=0, step=1, limit=4
    $region2: #{tpu_custom_call.1} parent=1 // loop_pre_header
      _
    $region3: #{tpu_custom_call.1} parent=1 // loop_header
      %s22 = sphi 0, %s26
      %p23 = scmp.ge.s32.totalorder %s22, 4
      %s32 = sphi 0, %s34
      %s35 = sphi 0, %s32
      %s36 = sphi 0, %s35
      %s52 = sphi 0, %s36
      %s58 = sphi 0, %s60
      %s61 = sphi 0, %s58
      %s62 = sphi 0, %s61
      %s78 = sphi 0, %s62
      %s84 = sphi 0, %s86
      %s87 = sphi 0, %s84
      %s88 = sphi 0, %s87
      %s104 = sphi 0, %s88
      %s110 = sphi 0, %s112
      %s113 = sphi 0, %s110
      %s114 = sphi 0, %s113
      %s130 = sphi 0, %s114
      %s136 = sphi 0, %s138
      %s139 = sphi 0, %s136
      %s140 = sphi 0, %s139
      %s156 = sphi 0, %s140
    $region4: #{tpu_custom_call.1} parent=1 // loop_header_branch
      %25 = sbr.rel (%p23) target = $region8
    $region5: #{tpu_custom_call.1} parent=1 // loop_body
      %s27 = ssub.s32 %s22, 1
      %s28 = ssub.s32 %s22, 2
      %s29 = sadd.s32 %s22, 1
      %s30 = ssub.s32 %s22, %s29
      %p31 = scmp.eq.s32.totalorder %s30, 0
      %s33 = sadd.s32 %s32, 1
      %s34 = scalar_select %p31, %s32, %s33
      %p37 = pneg %p31
      %p38 = scmp.eq.s32.totalorder %s22, 1
      %p39 = por %p37, %p38
      %p40 = scmp.ne.s32.totalorder %s32, %s35
      %p41 = scmp.eq.s32.totalorder %s22, 0
      %p42 = por %p40, %p41
      %p43 = scmp.ne.s32.totalorder %s32, %s35
      %p44 = scmp.eq.s32.totalorder %s27, 1
      %p45 = por %p43, %p44
      %p46 = scmp.ne.s32.totalorder %s35, %s36
      %p47 = scmp.eq.s32.totalorder %s27, 0
      %p48 = por %p46, %p47
      %p49 = scmp.ne.s32.totalorder %s35, %s36
      %p50 = scmp.eq.s32.totalorder %s28, 1
      %p51 = por %p49, %p50
      %p53 = scmp.ne.s32.totalorder %s36, %s52
      %p54 = scmp.eq.s32.totalorder %s28, 0
      %p55 = por %p53, %p54
      %s56 = ssub.s32 %s22, %s29
      %p57 = scmp.eq.s32.totalorder %s56, 0
      %s59 = sadd.s32 %s58, 1
      %s60 = scalar_select %p57, %s58, %s59
      %p63 = pneg %p57
      %p64 = scmp.eq.s32.totalorder %s22, 1
      %p65 = por %p63, %p64
      %p66 = scmp.ne.s32.totalorder %s58, %s61
      %p67 = scmp.eq.s32.totalorder %s22, 0
      %p68 = por %p66, %p67
      %p69 = scmp.ne.s32.totalorder %s58, %s61
      %p70 = scmp.eq.s32.totalorder %s27, 1
      %p71 = por %p69, %p70
      %p72 = scmp.ne.s32.totalorder %s61, %s62
      %p73 = scmp.eq.s32.totalorder %s27, 0
      %p74 = por %p72, %p73
      %p75 = scmp.ne.s32.totalorder %s61, %s62
      %p76 = scmp.eq.s32.totalorder %s28, 1
      %p77 = por %p75, %p76
      %p79 = scmp.ne.s32.totalorder %s62, %s78
      %p80 = scmp.eq.s32.totalorder %s28, 0
      %p81 = por %p79, %p80
      %s82 = ssub.s32 %s22, %s29
      %p83 = scmp.eq.s32.totalorder %s82, 0
      %s85 = sadd.s32 %s84, 1
      %s86 = scalar_select %p83, %s84, %s85
      %p89 = pneg %p83
      %p90 = scmp.eq.s32.totalorder %s22, 1
      %p91 = por %p89, %p90
      %p92 = scmp.ne.s32.totalorder %s84, %s87
      %p93 = scmp.eq.s32.totalorder %s22, 0
      %p94 = por %p92, %p93
      %p95 = scmp.ne.s32.totalorder %s84, %s87
      %p96 = scmp.eq.s32.totalorder %s27, 1
      %p97 = por %p95, %p96
      %p98 = scmp.ne.s32.totalorder %s87, %s88
      %p99 = scmp.eq.s32.totalorder %s27, 0
      %p100 = por %p98, %p99
      %p101 = scmp.ne.s32.totalorder %s87, %s88
      %p102 = scmp.eq.s32.totalorder %s28, 1
      %p103 = por %p101, %p102
      %p105 = scmp.ne.s32.totalorder %s88, %s104
      %p106 = scmp.eq.s32.totalorder %s28, 0
      %p107 = por %p105, %p106
      %s108 = ssub.s32 %s22, %s29
      %p109 = scmp.eq.s32.totalorder %s108, 0
      %s111 = sadd.s32 %s110, 1
      %s112 = scalar_select %p109, %s110, %s111
      %p115 = pneg %p109
      %p116 = scmp.eq.s32.totalorder %s22, 1
      %p117 = por %p115, %p116
      %p118 = scmp.ne.s32.totalorder %s110, %s113
      %p119 = scmp.eq.s32.totalorder %s22, 0
      %p120 = por %p118, %p119
      %p121 = scmp.ne.s32.totalorder %s110, %s113
      %p122 = scmp.eq.s32.totalorder %s27, 1
      %p123 = por %p121, %p122
      %p124 = scmp.ne.s32.totalorder %s113, %s114
      %p125 = scmp.eq.s32.totalorder %s27, 0
      %p126 = por %p124, %p125
      %p127 = scmp.ne.s32.totalorder %s113, %s114
      %p128 = scmp.eq.s32.totalorder %s28, 1
      %p129 = por %p127, %p128
      %p131 = scmp.ne.s32.totalorder %s114, %s130
      %p132 = scmp.eq.s32.totalorder %s28, 0
      %p133 = por %p131, %p132
      %s134 = ssub.s32 %s22, %s29
      %p135 = scmp.eq.s32.totalorder %s134, 0
      %s137 = sadd.s32 %s136, 1
      %s138 = scalar_select %p135, %s136, %s137
      %p141 = pneg %p135
      %p142 = scmp.eq.s32.totalorder %s22, 1
      %p143 = por %p141, %p142
      %p144 = scmp.ne.s32.totalorder %s136, %s139
      %p145 = scmp.eq.s32.totalorder %s22, 0
      %p146 = por %p144, %p145
      %p147 = scmp.ne.s32.totalorder %s136, %s139
      %p148 = scmp.eq.s32.totalorder %s27, 1
      %p149 = por %p147, %p148
      %p150 = scmp.ne.s32.totalorder %s139, %s140
      %p151 = scmp.eq.s32.totalorder %s27, 0
      %p152 = por %p150, %p151
      %p153 = scmp.ne.s32.totalorder %s139, %s140
      %p154 = scmp.eq.s32.totalorder %s28, 1
      %p155 = por %p153, %p154
      %p157 = scmp.ne.s32.totalorder %s140, %s156
      %p158 = scmp.eq.s32.totalorder %s28, 0
      %p159 = por %p157, %p158
      %p160 = scmp.le.s32.totalorder 1, %s22
      %p161 = scmp.lt.s32.totalorder %s22, 3
      %p162 = pnand %p160, %p161
      %p163 = pneg %p162
      // Predicated region
      $region9: #{tpu_custom_call.1} parent=5 // pred_check
        _
      $region10: #{tpu_custom_call.1} parent=5 // pred_check_branch
        %165 = sbr.rel (%p162) target = $region12
      $region11: #{tpu_custom_call.1} parent=5 // pred_region
        %s166 = ssub.s32 %s22, 1
      $region12: #{tpu_custom_call.1} parent=5 // pred_fallthru
        _
      %p167 = scmp.lt.s32.totalorder %s22, 2
      // Predicated region
      $region13: #{tpu_custom_call.1} parent=5 // pred_check
        %p168 = pneg %p167
      $region14: #{tpu_custom_call.1} parent=5 // pred_check_branch
        %170 = sbr.rel (%p168) target = $region16
      $region15: #{tpu_custom_call.1} parent=5 // pred_region
        // Predicated region
        $region17: #{tpu_custom_call.1} parent=15 // pred_check
          %p171 = pneg %p42
        $region18: #{tpu_custom_call.1} parent=15 // pred_check_branch
          %173 = sbr.rel (%p171) target = $region20
        $region19: #{tpu_custom_call.1} parent=15 // pred_region
          %s174 = sand.u32 %s32, 1
          %s175 = scalar_lea.sflag [#allocation4], %s174
          %s176 = sand.u32 %s32, 1
          %s177 = smul.addr %s176, 48
          %s178 = scalar_lea.vmem [#allocation3], %s177
          %180 = vsyncadd %s175, 0
          %s181 = smul.addr %s22, 6
          %s182 = smul.addr %s181, 8
          %s183 = scalar_lea.hbm %s0, %s182
          %s184 = sshll.u32 %s183, 4
          %s185 = int_to_ptr.hbm [resolvable:$true] %s184
          %s186 = sshll.u32 %s178, 4
          %s187 = int_to_ptr.vmem [resolvable:$true] %s186
          %192 = dma.hbm_to_vmem [thread:$0]  %s185, 768, %s187, %s175, 128, 128, 8
        $region20: #{tpu_custom_call.1} parent=15 // pred_fallthru
          _
        // Predicated region
        $region21: #{tpu_custom_call.1} parent=15 // pred_check
          %p193 = pneg %p68
        $region22: #{tpu_custom_call.1} parent=15 // pred_check_branch
          %195 = sbr.rel (%p193) target = $region24
        $region23: #{tpu_custom_call.1} parent=15 // pred_region
          %s196 = sand.u32 %s22, 1
          %s197 = scalar_lea.sflag [#allocation7], %s196
          %s198 = sand.u32 %s58, 1
          %s199 = smul.addr %s198, 48
          %s200 = scalar_lea.vmem [#allocation6], %s199
          %202 = vsyncadd %s197, 0
          %s203 = smul.addr %s22, 6
          %s204 = smul.addr %s203, 8
          %s205 = scalar_lea.hbm %s1, %s204
          %s206 = sshll.u32 %s205, 4
          %s207 = int_to_ptr.hbm [resolvable:$true] %s206
          %s208 = sshll.u32 %s200, 4
          %s209 = int_to_ptr.vmem [resolvable:$true] %s208
          %214 = dma.hbm_to_vmem [thread:$0]  %s207, 768, %s209, %s197, 128, 128, 8
        $region24: #{tpu_custom_call.1} parent=15 // pred_fallthru
          _
        // Predicated region
        $region25: #{tpu_custom_call.1} parent=15 // pred_check
          %p215 = pneg %p94
        $region26: #{tpu_custom_call.1} parent=15 // pred_check_branch
          %217 = sbr.rel (%p215) target = $region28
        $region27: #{tpu_custom_call.1} parent=15 // pred_region
          %s218 = sand.u32 %s22, 1
          %s219 = scalar_lea.sflag [#allocation7], %s218
          %s220 = sand.u32 %s84, 1
          %s221 = smul.addr %s220, 48
          %s222 = scalar_lea.vmem [#allocation8], %s221
          %224 = vsyncadd %s219, 0
          %s225 = smul.addr %s22, 6
          %s226 = smul.addr %s225, 8
          %s227 = scalar_lea.hbm %s2, %s226
          %s228 = sshll.u32 %s227, 4
          %s229 = int_to_ptr.hbm [resolvable:$true] %s228
          %s230 = sshll.u32 %s222, 4
          %s231 = int_to_ptr.vmem [resolvable:$true] %s230
          %236 = dma.hbm_to_vmem [thread:$0]  %s229, 768, %s231, %s219, 128, 128, 8
        $region28: #{tpu_custom_call.1} parent=15 // pred_fallthru
          _
        // Predicated region
        $region29: #{tpu_custom_call.1} parent=15 // pred_check
          %p237 = pneg %p120
        $region30: #{tpu_custom_call.1} parent=15 // pred_check_branch
          %239 = sbr.rel (%p237) target = $region32
        $region31: #{tpu_custom_call.1} parent=15 // pred_region
          %s240 = sand.u32 %s110, 1
          %s241 = scalar_lea.sflag [#allocation10], %s240
          %s242 = sand.u32 %s110, 1
          %s243 = smul.addr %s242, 16
          %s244 = scalar_lea.vmem [#allocation9], %s243
          %246 = vsyncadd %s241, 0
          %s247 = smul.addr %s22, 2
          %s248 = smul.addr %s247, 8
          %s249 = scalar_lea.hbm %s3, %s248
          %s250 = sshll.u32 %s249, 4
          %s251 = int_to_ptr.hbm [resolvable:$true] %s250
          %s252 = sshll.u32 %s244, 4
          %s253 = int_to_ptr.vmem [resolvable:$true] %s252
          %258 = dma.hbm_to_vmem [thread:$0]  %s251, 256, %s253, %s241, 128, 128, 8
        $region32: #{tpu_custom_call.1} parent=15 // pred_fallthru
          _
      $region16: #{tpu_custom_call.1} parent=5 // pred_fallthru
        _
      %p259 = scmp.le.s32.totalorder 1, %s22
      %p260 = scmp.lt.s32.totalorder %s22, 3
      %p261 = pnand %p259, %p260
      %p262 = pneg %p261
      // Predicated region
      $region33: #{tpu_custom_call.1} parent=5 // pred_check
        _
      $region34: #{tpu_custom_call.1} parent=5 // pred_check_branch
        %264 = sbr.rel (%p261) target = $region36
      $region35: #{tpu_custom_call.1} parent=5 // pred_region
        %s265 = ssub.s32 %s22, 1
        %s266 = sand.u32 %s35, 1
        %s267 = scalar_lea.sflag [#allocation4], %s266
        %s268 = sand.u32 %s35, 1
        %s269 = smul.addr %s268, 48
        %s270 = scalar_lea.vmem [#allocation3], %s269
        // Predicated region
        $region37: #{tpu_custom_call.1} parent=35 // pred_check
          %p271 = pneg %p48
        $region38: #{tpu_custom_call.1} parent=35 // pred_check_branch
          %273 = sbr.rel (%p271) target = $region40
        $region39: #{tpu_custom_call.1} parent=35 // pred_region
          %275 = dma.done %s267, 768
        $region40: #{tpu_custom_call.1} parent=35 // pred_fallthru
          _
        %s276 = sand.u32 %s27, 1
        %s277 = scalar_lea.sflag [#allocation7], %s276
        %s278 = sand.u32 %s61, 1
        %s279 = smul.addr %s278, 48
        %s280 = scalar_lea.vmem [#allocation6], %s279
        // Predicated region
        $region41: #{tpu_custom_call.1} parent=35 // pred_check
          %p281 = pneg %p74
        $region42: #{tpu_custom_call.1} parent=35 // pred_check_branch
          %283 = sbr.rel (%p281) target = $region44
        $region43: #{tpu_custom_call.1} parent=35 // pred_region
          %285 = dma.done %s277, 768
        $region44: #{tpu_custom_call.1} parent=35 // pred_fallthru
          _
        %s286 = sand.u32 %s27, 1
        %s287 = scalar_lea.sflag [#allocation7], %s286
        %s288 = sand.u32 %s87, 1
        %s289 = smul.addr %s288, 48
        %s290 = scalar_lea.vmem [#allocation8], %s289
        // Predicated region
        $region45: #{tpu_custom_call.1} parent=35 // pred_check
          %p291 = pneg %p100
        $region46: #{tpu_custom_call.1} parent=35 // pred_check_branch
          %293 = sbr.rel (%p291) target = $region48
        $region47: #{tpu_custom_call.1} parent=35 // pred_region
          %295 = dma.done %s287, 768
        $region48: #{tpu_custom_call.1} parent=35 // pred_fallthru
          _
        %s296 = sand.u32 %s113, 1
        %s297 = scalar_lea.sflag [#allocation10], %s296
        %s298 = sand.u32 %s113, 1
        %s299 = smul.addr %s298, 16
        %s300 = scalar_lea.vmem [#allocation9], %s299
        // Predicated region
        $region49: #{tpu_custom_call.1} parent=35 // pred_check
          %p301 = pneg %p126
        $region50: #{tpu_custom_call.1} parent=35 // pred_check_branch
          %303 = sbr.rel (%p301) target = $region52
        $region51: #{tpu_custom_call.1} parent=35 // pred_region
          %305 = dma.done %s297, 256
        $region52: #{tpu_custom_call.1} parent=35 // pred_fallthru
          _
        %s306 = sand.u32 %s35, 1
        %s307 = scalar_lea.sflag [#allocation4], %s306
        %s308 = sand.u32 %s35, 1
        %s309 = smul.addr %s308, 48
        %s310 = scalar_lea.vmem [#allocation3], %s309
        %p311 = pneg %p48
        %p312 = pneg %p45
        %s313 = sand.u32 %s27, 1
        %s314 = scalar_lea.sflag [#allocation7], %s313
        %s315 = sand.u32 %s61, 1
        %s316 = smul.addr %s315, 48
        %s317 = scalar_lea.vmem [#allocation6], %s316
        %p318 = pneg %p74
        %p319 = pneg %p71
        %s320 = sand.u32 %s27, 1
        %s321 = scalar_lea.sflag [#allocation7], %s320
        %s322 = sand.u32 %s87, 1
        %s323 = smul.addr %s322, 48
        %s324 = scalar_lea.vmem [#allocation8], %s323
        %p325 = pneg %p100
        %p326 = pneg %p97
        %s327 = sand.u32 %s113, 1
        %s328 = scalar_lea.sflag [#allocation10], %s327
        %s329 = sand.u32 %s113, 1
        %s330 = smul.addr %s329, 16
        %s331 = scalar_lea.vmem [#allocation9], %s330
        %p332 = pneg %p126
        %p333 = pneg %p123
        %p334 = pneg %p152
        %p335 = pneg %p149
        %s336 = sand.u32 %s139, 1
        %s337 = scalar_lea.sflag [#allocation5], %s336
        %s338 = sand.u32 %s139, 1
        %s339 = smul.addr %s338, 8
        %s340 = scalar_lea.vmem [#allocation11], %s339
        %vm341 = vcmask 146432
        %342 = vst.msk [vmem:[#allocation2] sm:$0xff] %vm341, 0.0
        %343 = vst.msk [vmem:[#allocation2 + $0x8] sm:$0xff] %vm341, 0.0
        %vm344 = vcmask 140288
        %345 = vst.msk [vmem:[#allocation2 + $0x10] sm:$0x3] %vm344, 0.0
        %v346 = vld [vmem:[%s300] sm:$0xff]
        %v347 = vld [vmem:[%s300 + $0x8] sm:$0xff]
        %v348 = vld [vmem:[%s270] sm:$0xff]
        %v349 = vld [vmem:[%s270 + $0x8] sm:$0xff]
        %v350 = vld [vmem:[%s280] sm:$0xff]
        %v351 = vld [vmem:[%s280 + $0x8] sm:$0xff]
        %v352 = vld [vmem:[%s290] sm:$0xff]
        %v353 = vld [vmem:[%s290 + $0x8] sm:$0xff]
        %v354 = vmul.f32 %v352, %v346
        %v355 = vmul.f32 %v353, %v347
        %v356 = vmax.f32 %v348, %v350
        %v357 = vmax.f32 %v349, %v351
        %v358 = vsub.f32 %v354, %v356
        %v359 = vsub.f32 %v355, %v357
        %v360 = vand.u32 2147483647, %v358
        %v361 = vand.u32 2147483647, %v359
        %v362 = vadd.f32 %v360, 0.0
        %v363 = vadd.f32 %v361, 0.0
        %366 = vrot.lane.b32.xlu0 %v354, 1
        %v367 = vpop.permute.xlu0 %366
        %368 = vrot.lane.b32.xlu0 %v355, 1
        %v369 = vpop.permute.xlu0 %368
        %vm372 = vcmask 138248
        %373 = vst.msk [vmem:[#allocation2 + $0x1] sm:$0xff] %vm372, %v367
        %374 = vst.msk [vmem:[#allocation2 + $0x9] sm:$0xff] %vm372, %v369
        %v375 = vld [vmem:[#allocation2] sm:$0xff]
        %v376 = vld [vmem:[#allocation2 + $0x8] sm:$0xff]
        %v377 = vld [vmem:[#allocation2 + $0x1] sm:$0xff]
        %v378 = vld [vmem:[#allocation2 + $0x9] sm:$0xff]
        %v379 = vld [vmem:[#allocation2 + $0x2] sm:$0xff]
        %v380 = vld [vmem:[#allocation2 + $0xa] sm:$0xff]
        %383 = vrot.lane.b32.xlu0 %v375, 2
        %v384 = vpop.permute.xlu0 %383
        %385 = vrot.lane.b32.xlu0 %v376, 2
        %v386 = vpop.permute.xlu0 %385
        %v389 = vsub.f32 %v375, %v384
        %v390 = vsub.f32 %v376, %v386
        %393 = vrot.lane.b32.xlu0 %v377, 2
        %v394 = vpop.permute.xlu0 %393
        %395 = vrot.lane.b32.xlu0 %v378, 2
        %v396 = vpop.permute.xlu0 %395
        %v399 = vsub.f32 %v377, %v394
        %v400 = vsub.f32 %v378, %v396
        %v401 = vmul.f32 %v399, 2.0
        %v402 = vmul.f32 %v400, 2.0
        %v403 = vadd.f32 %v389, %v401
        %v404 = vadd.f32 %v390, %v402
        %407 = vrot.lane.b32.xlu0 %v379, 2
        %v408 = vpop.permute.xlu0 %407
        %409 = vrot.lane.b32.xlu0 %v380, 2
        %v410 = vpop.permute.xlu0 %409
        %v413 = vsub.f32 %v379, %v408
        %v414 = vsub.f32 %v380, %v410
        %v415 = vadd.f32 %v403, %v413
        %v416 = vadd.f32 %v404, %v414
        %v417 = vmul.f32 %v375, 2.0
        %v418 = vmul.f32 %v376, 2.0
        %421 = vrot.lane.b32.xlu0 %v417, 127
        %v422 = vpop.permute.xlu0 %421
        %423 = vrot.lane.b32.xlu0 %v418, 127
        %v424 = vpop.permute.xlu0 %423
        %v427 = vadd.f32 %v375, %v422
        %v428 = vadd.f32 %v376, %v424
        %429 = vrot.lane.b32.xlu0 %v375, 126
        %v430 = vpop.permute.xlu0 %429
        %431 = vrot.lane.b32.xlu0 %v376, 126
        %v432 = vpop.permute.xlu0 %431
        %v435 = vadd.f32 %v427, %v430
        %v436 = vadd.f32 %v428, %v432
        %v437 = vmul.f32 %v379, 2.0
        %v438 = vmul.f32 %v380, 2.0
        %441 = vrot.lane.b32.xlu0 %v437, 127
        %v442 = vpop.permute.xlu0 %441
        %443 = vrot.lane.b32.xlu0 %v438, 127
        %v444 = vpop.permute.xlu0 %443
        %v447 = vadd.f32 %v379, %v442
        %v448 = vadd.f32 %v380, %v444
        %449 = vrot.lane.b32.xlu0 %v379, 126
        %v450 = vpop.permute.xlu0 %449
        %451 = vrot.lane.b32.xlu0 %v380, 126
        %v452 = vpop.permute.xlu0 %451
        %v455 = vadd.f32 %v447, %v450
        %v456 = vadd.f32 %v448, %v452
        %v457 = vsub.f32 %v435, %v455
        %v458 = vsub.f32 %v436, %v456
        %461 = vrot.lane.b32.xlu0 %v348, 1
        %v462 = vpop.permute.xlu0 %461
        %463 = vrot.lane.b32.xlu0 %v349, 1
        %v464 = vpop.permute.xlu0 %463
        %467 = vst.msk [vmem:[#allocation2 + $0x1] sm:$0xff] %vm372, %v462
        %468 = vst.msk [vmem:[#allocation2 + $0x9] sm:$0xff] %vm372, %v464
        %v469 = vld [vmem:[#allocation2] sm:$0xff]
        %v470 = vld [vmem:[#allocation2 + $0x8] sm:$0xff]
        %v471 = vld [vmem:[#allocation2 + $0x1] sm:$0xff]
        %v472 = vld [vmem:[#allocation2 + $0x9] sm:$0xff]
        %v473 = vld [vmem:[#allocation2 + $0x2] sm:$0xff]
        %v474 = vld [vmem:[#allocation2 + $0xa] sm:$0xff]
        %477 = vrot.lane.b32.xlu0 %v469, 2
        %v478 = vpop.permute.xlu0 %477
        %479 = vrot.lane.b32.xlu0 %v470, 2
        %v480 = vpop.permute.xlu0 %479
        %v483 = vsub.f32 %v469, %v478
        %v484 = vsub.f32 %v470, %v480
        %487 = vrot.lane.b32.xlu0 %v471, 2
        %v488 = vpop.permute.xlu0 %487
        %489 = vrot.lane.b32.xlu0 %v472, 2
        %v490 = vpop.permute.xlu0 %489
        %v493 = vsub.f32 %v471, %v488
        %v494 = vsub.f32 %v472, %v490
        %v495 = vmul.f32 %v493, 2.0
        %v496 = vmul.f32 %v494, 2.0
        %v497 = vadd.f32 %v483, %v495
        %v498 = vadd.f32 %v484, %v496
        %501 = vrot.lane.b32.xlu0 %v473, 2
        %v502 = vpop.permute.xlu0 %501
        %503 = vrot.lane.b32.xlu0 %v474, 2
        %v504 = vpop.permute.xlu0 %503
        %v507 = vsub.f32 %v473, %v502
        %v508 = vsub.f32 %v474, %v504
        %v509 = vadd.f32 %v497, %v507
        %v510 = vadd.f32 %v498, %v508
        %v511 = vmul.f32 %v469, 2.0
        %v512 = vmul.f32 %v470, 2.0
        %515 = vrot.lane.b32.xlu0 %v511, 127
        %v516 = vpop.permute.xlu0 %515
        %517 = vrot.lane.b32.xlu0 %v512, 127
        %v518 = vpop.permute.xlu0 %517
        %v521 = vadd.f32 %v469, %v516
        %v522 = vadd.f32 %v470, %v518
        %523 = vrot.lane.b32.xlu0 %v469, 126
        %v524 = vpop.permute.xlu0 %523
        %525 = vrot.lane.b32.xlu0 %v470, 126
        %v526 = vpop.permute.xlu0 %525
        %v529 = vadd.f32 %v521, %v524
        %v530 = vadd.f32 %v522, %v526
        %v531 = vmul.f32 %v473, 2.0
        %v532 = vmul.f32 %v474, 2.0
        %535 = vrot.lane.b32.xlu0 %v531, 127
        %v536 = vpop.permute.xlu0 %535
        %537 = vrot.lane.b32.xlu0 %v532, 127
        %v538 = vpop.permute.xlu0 %537
        %v541 = vadd.f32 %v473, %v536
        %v542 = vadd.f32 %v474, %v538
        %543 = vrot.lane.b32.xlu0 %v473, 126
        %v544 = vpop.permute.xlu0 %543
        %545 = vrot.lane.b32.xlu0 %v474, 126
        %v546 = vpop.permute.xlu0 %545
        %v549 = vadd.f32 %v541, %v544
        %v550 = vadd.f32 %v542, %v546
        %v551 = vsub.f32 %v529, %v549
        %v552 = vsub.f32 %v530, %v550
        %555 = vrot.lane.b32.xlu0 %v350, 1
        %v556 = vpop.permute.xlu0 %555
        %557 = vrot.lane.b32.xlu0 %v351, 1
        %v558 = vpop.permute.xlu0 %557
        %561 = vst.msk [vmem:[#allocation2 + $0x1] sm:$0xff] %vm372, %v556
        %562 = vst.msk [vmem:[#allocation2 + $0x9] sm:$0xff] %vm372, %v558
        %v563 = vld [vmem:[#allocation2] sm:$0xff]
        %v564 = vld [vmem:[#allocation2 + $0x8] sm:$0xff]
        %v565 = vld [vmem:[#allocation2 + $0x1] sm:$0xff]
        %v566 = vld [vmem:[#allocation2 + $0x9] sm:$0xff]
        %v567 = vld [vmem:[#allocation2 + $0x2] sm:$0xff]
        %v568 = vld [vmem:[#allocation2 + $0xa] sm:$0xff]
        %571 = vrot.lane.b32.xlu0 %v563, 2
        %v572 = vpop.permute.xlu0 %571
        %573 = vrot.lane.b32.xlu0 %v564, 2
        %v574 = vpop.permute.xlu0 %573
        %v577 = vsub.f32 %v563, %v572
        %v578 = vsub.f32 %v564, %v574
        %581 = vrot.lane.b32.xlu0 %v565, 2
        %v582 = vpop.permute.xlu0 %581
        %583 = vrot.lane.b32.xlu0 %v566, 2
        %v584 = vpop.permute.xlu0 %583
        %v587 = vsub.f32 %v565, %v582
        %v588 = vsub.f32 %v566, %v584
        %v589 = vmul.f32 %v587, 2.0
        %v590 = vmul.f32 %v588, 2.0
        %v591 = vadd.f32 %v577, %v589
        %v592 = vadd.f32 %v578, %v590
        %595 = vrot.lane.b32.xlu0 %v567, 2
        %v596 = vpop.permute.xlu0 %595
        %597 = vrot.lane.b32.xlu0 %v568, 2
        %v598 = vpop.permute.xlu0 %597
        %v601 = vsub.f32 %v567, %v596
        %v602 = vsub.f32 %v568, %v598
        %v603 = vadd.f32 %v591, %v601
        %v604 = vadd.f32 %v592, %v602
        %v605 = vmul.f32 %v563, 2.0
        %v606 = vmul.f32 %v564, 2.0
        %609 = vrot.lane.b32.xlu0 %v605, 127
        %v610 = vpop.permute.xlu0 %609
        %611 = vrot.lane.b32.xlu0 %v606, 127
        %v612 = vpop.permute.xlu0 %611
        %v615 = vadd.f32 %v563, %v610
        %v616 = vadd.f32 %v564, %v612
        %617 = vrot.lane.b32.xlu0 %v563, 126
        %v618 = vpop.permute.xlu0 %617
        %619 = vrot.lane.b32.xlu0 %v564, 126
        %v620 = vpop.permute.xlu0 %619
        %v623 = vadd.f32 %v615, %v618
        %v624 = vadd.f32 %v616, %v620
        %v625 = vmul.f32 %v567, 2.0
        %v626 = vmul.f32 %v568, 2.0
        %629 = vrot.lane.b32.xlu0 %v625, 127
        %v630 = vpop.permute.xlu0 %629
        %631 = vrot.lane.b32.xlu0 %v626, 127
        %v632 = vpop.permute.xlu0 %631
        %v635 = vadd.f32 %v567, %v630
        %v636 = vadd.f32 %v568, %v632
        %637 = vrot.lane.b32.xlu0 %v567, 126
        %v638 = vpop.permute.xlu0 %637
        %639 = vrot.lane.b32.xlu0 %v568, 126
        %v640 = vpop.permute.xlu0 %639
        %v643 = vadd.f32 %v635, %v638
        %v644 = vadd.f32 %v636, %v640
        %v645 = vsub.f32 %v623, %v643
        %v646 = vsub.f32 %v624, %v644
        %v647 = vmax.f32 %v509, %v603
        %v648 = vmax.f32 %v510, %v604
        %v649 = vsub.f32 %v415, %v647
        %v650 = vsub.f32 %v416, %v648
        %v651 = vand.u32 2147483647, %v649
        %v652 = vand.u32 2147483647, %v650
        %v653 = vadd.f32 %v651, 0.0
        %v654 = vadd.f32 %v652, 0.0
        %v655 = vmax.f32 %v551, %v645
        %v656 = vmax.f32 %v552, %v646
        %v657 = vsub.f32 %v457, %v655
        %v658 = vsub.f32 %v458, %v656
        %v659 = vand.u32 2147483647, %v657
        %v660 = vand.u32 2147483647, %v658
        %v661 = vadd.f32 %v659, 0.0
        %v662 = vadd.f32 %v660, 0.0
        %v663 = vmul.f32 %v354, 0.299
        %v664 = vmul.f32 %v355, 0.299
        %v665 = vadd.f32 %v663, 0.0
        %v666 = vadd.f32 %v664, 0.0
        %v667 = vmul.f32 %v348, 0.299
        %v668 = vmul.f32 %v349, 0.299
        %v669 = vadd.f32 %v667, 0.0
        %v670 = vadd.f32 %v668, 0.0
        %s671 = scalar_lea.vmem %s270, 16 [#allocation3]
        %v672 = vld [vmem:[%s671] sm:$0xff]
        %v673 = vld [vmem:[%s671 + $0x8] sm:$0xff]
        %s674 = scalar_lea.vmem %s280, 16 [#allocation6]
        %v675 = vld [vmem:[%s674] sm:$0xff]
        %v676 = vld [vmem:[%s674 + $0x8] sm:$0xff]
        %s677 = scalar_lea.vmem %s290, 16 [#allocation8]
        %v678 = vld [vmem:[%s677] sm:$0xff]
        %v679 = vld [vmem:[%s677 + $0x8] sm:$0xff]
        %v680 = vmul.f32 %v678, %v346
        %v681 = vmul.f32 %v679, %v347
        %v682 = vmax.f32 %v672, %v675
        %v683 = vmax.f32 %v673, %v676
        %v684 = vsub.f32 %v680, %v682
        %v685 = vsub.f32 %v681, %v683
        %v686 = vand.u32 2147483647, %v684
        %v687 = vand.u32 2147483647, %v685
        %v688 = vadd.f32 %v362, %v686
        %v689 = vadd.f32 %v363, %v687
        %692 = vrot.lane.b32.xlu0 %v680, 1
        %v693 = vpop.permute.xlu0 %692
        %694 = vrot.lane.b32.xlu0 %v681, 1
        %v695 = vpop.permute.xlu0 %694
        %698 = vst.msk [vmem:[#allocation2 + $0x1] sm:$0xff] %vm372, %v693
        %699 = vst.msk [vmem:[#allocation2 + $0x9] sm:$0xff] %vm372, %v695
        %v700 = vld [vmem:[#allocation2] sm:$0xff]
        %v701 = vld [vmem:[#allocation2 + $0x8] sm:$0xff]
        %v702 = vld [vmem:[#allocation2 + $0x1] sm:$0xff]
        %v703 = vld [vmem:[#allocation2 + $0x9] sm:$0xff]
        %v704 = vld [vmem:[#allocation2 + $0x2] sm:$0xff]
        %v705 = vld [vmem:[#allocation2 + $0xa] sm:$0xff]
        %708 = vrot.lane.b32.xlu0 %v700, 2
        %v709 = vpop.permute.xlu0 %708
        %710 = vrot.lane.b32.xlu0 %v701, 2
        %v711 = vpop.permute.xlu0 %710
        %v714 = vsub.f32 %v700, %v709
        %v715 = vsub.f32 %v701, %v711
        %718 = vrot.lane.b32.xlu0 %v702, 2
        %v719 = vpop.permute.xlu0 %718
        %720 = vrot.lane.b32.xlu0 %v703, 2
        %v721 = vpop.permute.xlu0 %720
        %v724 = vsub.f32 %v702, %v719
        %v725 = vsub.f32 %v703, %v721
        %v726 = vmul.f32 %v724, 2.0
        %v727 = vmul.f32 %v725, 2.0
        %v728 = vadd.f32 %v714, %v726
        %v729 = vadd.f32 %v715, %v727
        %732 = vrot.lane.b32.xlu0 %v704, 2
        %v733 = vpop.permute.xlu0 %732
        %734 = vrot.lane.b32.xlu0 %v705, 2
        %v735 = vpop.permute.xlu0 %734
        %v738 = vsub.f32 %v704, %v733
        %v739 = vsub.f32 %v705, %v735
        %v740 = vadd.f32 %v728, %v738
        %v741 = vadd.f32 %v729, %v739
        %v742 = vmul.f32 %v700, 2.0
        %v743 = vmul.f32 %v701, 2.0
        %746 = vrot.lane.b32.xlu0 %v742, 127
        %v747 = vpop.permute.xlu0 %746
        %748 = vrot.lane.b32.xlu0 %v743, 127
        %v749 = vpop.permute.xlu0 %748
        %v752 = vadd.f32 %v700, %v747
        %v753 = vadd.f32 %v701, %v749
        %754 = vrot.lane.b32.xlu0 %v700, 126
        %v755 = vpop.permute.xlu0 %754
        %756 = vrot.lane.b32.xlu0 %v701, 126
        %v757 = vpop.permute.xlu0 %756
        %v760 = vadd.f32 %v752, %v755
        %v761 = vadd.f32 %v753, %v757
        %v762 = vmul.f32 %v704, 2.0
        %v763 = vmul.f32 %v705, 2.0
        %766 = vrot.lane.b32.xlu0 %v762, 127
        %v767 = vpop.permute.xlu0 %766
        %768 = vrot.lane.b32.xlu0 %v763, 127
        %v769 = vpop.permute.xlu0 %768
        %v772 = vadd.f32 %v704, %v767
        %v773 = vadd.f32 %v705, %v769
        %774 = vrot.lane.b32.xlu0 %v704, 126
        %v775 = vpop.permute.xlu0 %774
        %776 = vrot.lane.b32.xlu0 %v705, 126
        %v777 = vpop.permute.xlu0 %776
        %v780 = vadd.f32 %v772, %v775
        %v781 = vadd.f32 %v773, %v777
        %v782 = vsub.f32 %v760, %v780
        %v783 = vsub.f32 %v761, %v781
        %786 = vrot.lane.b32.xlu0 %v672, 1
        %v787 = vpop.permute.xlu0 %786
        %788 = vrot.lane.b32.xlu0 %v673, 1
        %v789 = vpop.permute.xlu0 %788
        %792 = vst.msk [vmem:[#allocation2 + $0x1] sm:$0xff] %vm372, %v787
        %793 = vst.msk [vmem:[#allocation2 + $0x9] sm:$0xff] %vm372, %v789
        %v794 = vld [vmem:[#allocation2] sm:$0xff]
        %v795 = vld [vmem:[#allocation2 + $0x8] sm:$0xff]
        %v796 = vld [vmem:[#allocation2 + $0x1] sm:$0xff]
        %v797 = vld [vmem:[#allocation2 + $0x9] sm:$0xff]
        %v798 = vld [vmem:[#allocation2 + $0x2] sm:$0xff]
        %v799 = vld [vmem:[#allocation2 + $0xa] sm:$0xff]
        %802 = vrot.lane.b32.xlu0 %v794, 2
        %v803 = vpop.permute.xlu0 %802
        %804 = vrot.lane.b32.xlu0 %v795, 2
        %v805 = vpop.permute.xlu0 %804
        %v808 = vsub.f32 %v794, %v803
        %v809 = vsub.f32 %v795, %v805
        %812 = vrot.lane.b32.xlu0 %v796, 2
        %v813 = vpop.permute.xlu0 %812
        %814 = vrot.lane.b32.xlu0 %v797, 2
        %v815 = vpop.permute.xlu0 %814
        %v818 = vsub.f32 %v796, %v813
        %v819 = vsub.f32 %v797, %v815
        %v820 = vmul.f32 %v818, 2.0
        %v821 = vmul.f32 %v819, 2.0
        %v822 = vadd.f32 %v808, %v820
        %v823 = vadd.f32 %v809, %v821
        %826 = vrot.lane.b32.xlu0 %v798, 2
        %v827 = vpop.permute.xlu0 %826
        %828 = vrot.lane.b32.xlu0 %v799, 2
        %v829 = vpop.permute.xlu0 %828
        %v832 = vsub.f32 %v798, %v827
        %v833 = vsub.f32 %v799, %v829
        %v834 = vadd.f32 %v822, %v832
        %v835 = vadd.f32 %v823, %v833
        %v836 = vmul.f32 %v794, 2.0
        %v837 = vmul.f32 %v795, 2.0
        %840 = vrot.lane.b32.xlu0 %v836, 127
        %v841 = vpop.permute.xlu0 %840
        %842 = vrot.lane.b32.xlu0 %v837, 127
        %v843 = vpop.permute.xlu0 %842
        %v846 = vadd.f32 %v794, %v841
        %v847 = vadd.f32 %v795, %v843
        %848 = vrot.lane.b32.xlu0 %v794, 126
        %v849 = vpop.permute.xlu0 %848
        %850 = vrot.lane.b32.xlu0 %v795, 126
        %v851 = vpop.permute.xlu0 %850
        %v854 = vadd.f32 %v846, %v849
        %v855 = vadd.f32 %v847, %v851
        %v856 = vmul.f32 %v798, 2.0
        %v857 = vmul.f32 %v799, 2.0
        %860 = vrot.lane.b32.xlu0 %v856, 127
        %v861 = vpop.permute.xlu0 %860
        %862 = vrot.lane.b32.xlu0 %v857, 127
        %v863 = vpop.permute.xlu0 %862
        %v866 = vadd.f32 %v798, %v861
        %v867 = vadd.f32 %v799, %v863
        %868 = vrot.lane.b32.xlu0 %v798, 126
        %v869 = vpop.permute.xlu0 %868
        %870 = vrot.lane.b32.xlu0 %v799, 126
        %v871 = vpop.permute.xlu0 %870
        %v874 = vadd.f32 %v866, %v869
        %v875 = vadd.f32 %v867, %v871
        %v876 = vsub.f32 %v854, %v874
        %v877 = vsub.f32 %v855, %v875
        %880 = vrot.lane.b32.xlu0 %v675, 1
        %v881 = vpop.permute.xlu0 %880
        %882 = vrot.lane.b32.xlu0 %v676, 1
        %v883 = vpop.permute.xlu0 %882
        %886 = vst.msk [vmem:[#allocation2 + $0x1] sm:$0xff] %vm372, %v881
        %887 = vst.msk [vmem:[#allocation2 + $0x9] sm:$0xff] %vm372, %v883
        %v888 = vld [vmem:[#allocation2] sm:$0xff]
        %v889 = vld [vmem:[#allocation2 + $0x8] sm:$0xff]
        %v890 = vld [vmem:[#allocation2 + $0x1] sm:$0xff]
        %v891 = vld [vmem:[#allocation2 + $0x9] sm:$0xff]
        %v892 = vld [vmem:[#allocation2 + $0x2] sm:$0xff]
        %v893 = vld [vmem:[#allocation2 + $0xa] sm:$0xff]
        %896 = vrot.lane.b32.xlu0 %v888, 2
        %v897 = vpop.permute.xlu0 %896
        %898 = vrot.lane.b32.xlu0 %v889, 2
        %v899 = vpop.permute.xlu0 %898
        %v902 = vsub.f32 %v888, %v897
        %v903 = vsub.f32 %v889, %v899
        %906 = vrot.lane.b32.xlu0 %v890, 2
        %v907 = vpop.permute.xlu0 %906
        %908 = vrot.lane.b32.xlu0 %v891, 2
        %v909 = vpop.permute.xlu0 %908
        %v912 = vsub.f32 %v890, %v907
        %v913 = vsub.f32 %v891, %v909
        %v914 = vmul.f32 %v912, 2.0
        %v915 = vmul.f32 %v913, 2.0
        %v916 = vadd.f32 %v902, %v914
        %v917 = vadd.f32 %v903, %v915
        %920 = vrot.lane.b32.xlu0 %v892, 2
        %v921 = vpop.permute.xlu0 %920
        %922 = vrot.lane.b32.xlu0 %v893, 2
        %v923 = vpop.permute.xlu0 %922
        %v926 = vsub.f32 %v892, %v921
        %v927 = vsub.f32 %v893, %v923
        %v928 = vadd.f32 %v916, %v926
        %v929 = vadd.f32 %v917, %v927
        %v930 = vmul.f32 %v888, 2.0
        %v931 = vmul.f32 %v889, 2.0
        %934 = vrot.lane.b32.xlu0 %v930, 127
        %v935 = vpop.permute.xlu0 %934
        %936 = vrot.lane.b32.xlu0 %v931, 127
        %v937 = vpop.permute.xlu0 %936
        %v940 = vadd.f32 %v888, %v935
        %v941 = vadd.f32 %v889, %v937
        %942 = vrot.lane.b32.xlu0 %v888, 126
        %v943 = vpop.permute.xlu0 %942
        %944 = vrot.lane.b32.xlu0 %v889, 126
        %v945 = vpop.permute.xlu0 %944
        %v948 = vadd.f32 %v940, %v943
        %v949 = vadd.f32 %v941, %v945
        %v950 = vmul.f32 %v892, 2.0
        %v951 = vmul.f32 %v893, 2.0
        %954 = vrot.lane.b32.xlu0 %v950, 127
        %v955 = vpop.permute.xlu0 %954
        %956 = vrot.lane.b32.xlu0 %v951, 127
        %v957 = vpop.permute.xlu0 %956
        %v960 = vadd.f32 %v892, %v955
        %v961 = vadd.f32 %v893, %v957
        %962 = vrot.lane.b32.xlu0 %v892, 126
        %v963 = vpop.permute.xlu0 %962
        %964 = vrot.lane.b32.xlu0 %v893, 126
        %v965 = vpop.permute.xlu0 %964
        %v968 = vadd.f32 %v960, %v963
        %v969 = vadd.f32 %v961, %v965
        %v970 = vsub.f32 %v948, %v968
        %v971 = vsub.f32 %v949, %v969
        %v972 = vmax.f32 %v834, %v928
        %v973 = vmax.f32 %v835, %v929
        %v974 = vsub.f32 %v740, %v972
        %v975 = vsub.f32 %v741, %v973
        %v976 = vand.u32 2147483647, %v974
        %v977 = vand.u32 2147483647, %v975
        %v978 = vadd.f32 %v653, %v976
        %v979 = vadd.f32 %v654, %v977
        %v980 = vmax.f32 %v876, %v970
        %v981 = vmax.f32 %v877, %v971
        %v982 = vsub.f32 %v782, %v980
        %v983 = vsub.f32 %v783, %v981
        %v984 = vand.u32 2147483647, %v982
        %v985 = vand.u32 2147483647, %v983
        %v986 = vadd.f32 %v661, %v984
        %v987 = vadd.f32 %v662, %v985
        %v988 = vmul.f32 %v680, 0.587
        %v989 = vmul.f32 %v681, 0.587
        %v990 = vadd.f32 %v665, %v988
        %v991 = vadd.f32 %v666, %v989
        %v992 = vmul.f32 %v672, 0.587
        %v993 = vmul.f32 %v673, 0.587
        %v994 = vadd.f32 %v669, %v992
        %v995 = vadd.f32 %v670, %v993
        %s996 = scalar_lea.vmem %s270, 32 [#allocation3]
        %v997 = vld [vmem:[%s996] sm:$0xff]
        %v998 = vld [vmem:[%s996 + $0x8] sm:$0xff]
        %s999 = scalar_lea.vmem %s280, 32 [#allocation6]
        %v1000 = vld [vmem:[%s999] sm:$0xff]
        %v1001 = vld [vmem:[%s999 + $0x8] sm:$0xff]
        %s1002 = scalar_lea.vmem %s290, 32 [#allocation8]
        %v1003 = vld [vmem:[%s1002] sm:$0xff]
        %v1004 = vld [vmem:[%s1002 + $0x8] sm:$0xff]
        %v1005 = vmul.f32 %v1003, %v346
        %v1006 = vmul.f32 %v1004, %v347
        %v1007 = vmax.f32 %v997, %v1000
        %v1008 = vmax.f32 %v998, %v1001
        %v1009 = vsub.f32 %v1005, %v1007
        %v1010 = vsub.f32 %v1006, %v1008
        %v1011 = vand.u32 2147483647, %v1009
        %v1012 = vand.u32 2147483647, %v1010
        %v1013 = vadd.f32 %v688, %v1011
        %v1014 = vadd.f32 %v689, %v1012
        %1017 = vrot.lane.b32.xlu0 %v1005, 1
        %v1018 = vpop.permute.xlu0 %1017
        %1019 = vrot.lane.b32.xlu0 %v1006, 1
        %v1020 = vpop.permute.xlu0 %1019
        %1023 = vst.msk [vmem:[#allocation2 + $0x1] sm:$0xff] %vm372, %v1018
        %1024 = vst.msk [vmem:[#allocation2 + $0x9] sm:$0xff] %vm372, %v1020
        %v1025 = vld [vmem:[#allocation2] sm:$0xff]
        %v1026 = vld [vmem:[#allocation2 + $0x8] sm:$0xff]
        %v1027 = vld [vmem:[#allocation2 + $0x1] sm:$0xff]
        %v1028 = vld [vmem:[#allocation2 + $0x9] sm:$0xff]
        %v1029 = vld [vmem:[#allocation2 + $0x2] sm:$0xff]
        %v1030 = vld [vmem:[#allocation2 + $0xa] sm:$0xff]
        %1033 = vrot.lane.b32.xlu0 %v1025, 2
        %v1034 = vpop.permute.xlu0 %1033
        %1035 = vrot.lane.b32.xlu0 %v1026, 2
        %v1036 = vpop.permute.xlu0 %1035
        %v1039 = vsub.f32 %v1025, %v1034
        %v1040 = vsub.f32 %v1026, %v1036
        %1043 = vrot.lane.b32.xlu0 %v1027, 2
        %v1044 = vpop.permute.xlu0 %1043
        %1045 = vrot.lane.b32.xlu0 %v1028, 2
        %v1046 = vpop.permute.xlu0 %1045
        %v1049 = vsub.f32 %v1027, %v1044
        %v1050 = vsub.f32 %v1028, %v1046
        %v1051 = vmul.f32 %v1049, 2.0
        %v1052 = vmul.f32 %v1050, 2.0
        %v1053 = vadd.f32 %v1039, %v1051
        %v1054 = vadd.f32 %v1040, %v1052
        %1057 = vrot.lane.b32.xlu0 %v1029, 2
        %v1058 = vpop.permute.xlu0 %1057
        %1059 = vrot.lane.b32.xlu0 %v1030, 2
        %v1060 = vpop.permute.xlu0 %1059
        %v1063 = vsub.f32 %v1029, %v1058
        %v1064 = vsub.f32 %v1030, %v1060
        %v1065 = vadd.f32 %v1053, %v1063
        %v1066 = vadd.f32 %v1054, %v1064
        %v1067 = vmul.f32 %v1025, 2.0
        %v1068 = vmul.f32 %v1026, 2.0
        %1071 = vrot.lane.b32.xlu0 %v1067, 127
        %v1072 = vpop.permute.xlu0 %1071
        %1073 = vrot.lane.b32.xlu0 %v1068, 127
        %v1074 = vpop.permute.xlu0 %1073
        %v1077 = vadd.f32 %v1025, %v1072
        %v1078 = vadd.f32 %v1026, %v1074
        %1079 = vrot.lane.b32.xlu0 %v1025, 126
        %v1080 = vpop.permute.xlu0 %1079
        %1081 = vrot.lane.b32.xlu0 %v1026, 126
        %v1082 = vpop.permute.xlu0 %1081
        %v1085 = vadd.f32 %v1077, %v1080
        %v1086 = vadd.f32 %v1078, %v1082
        %v1087 = vmul.f32 %v1029, 2.0
        %v1088 = vmul.f32 %v1030, 2.0
        %1091 = vrot.lane.b32.xlu0 %v1087, 127
        %v1092 = vpop.permute.xlu0 %1091
        %1093 = vrot.lane.b32.xlu0 %v1088, 127
        %v1094 = vpop.permute.xlu0 %1093
        %v1097 = vadd.f32 %v1029, %v1092
        %v1098 = vadd.f32 %v1030, %v1094
        %1099 = vrot.lane.b32.xlu0 %v1029, 126
        %v1100 = vpop.permute.xlu0 %1099
        %1101 = vrot.lane.b32.xlu0 %v1030, 126
        %v1102 = vpop.permute.xlu0 %1101
        %v1105 = vadd.f32 %v1097, %v1100
        %v1106 = vadd.f32 %v1098, %v1102
        %v1107 = vsub.f32 %v1085, %v1105
        %v1108 = vsub.f32 %v1086, %v1106
        %1111 = vrot.lane.b32.xlu0 %v997, 1
        %v1112 = vpop.permute.xlu0 %1111
        %1113 = vrot.lane.b32.xlu0 %v998, 1
        %v1114 = vpop.permute.xlu0 %1113
        %1117 = vst.msk [vmem:[#allocation2 + $0x1] sm:$0xff] %vm372, %v1112
        %1118 = vst.msk [vmem:[#allocation2 + $0x9] sm:$0xff] %vm372, %v1114
        %v1119 = vld [vmem:[#allocation2] sm:$0xff]
        %v1120 = vld [vmem:[#allocation2 + $0x8] sm:$0xff]
        %v1121 = vld [vmem:[#allocation2 + $0x1] sm:$0xff]
        %v1122 = vld [vmem:[#allocation2 + $0x9] sm:$0xff]
        %v1123 = vld [vmem:[#allocation2 + $0x2] sm:$0xff]
        %v1124 = vld [vmem:[#allocation2 + $0xa] sm:$0xff]
        %1127 = vrot.lane.b32.xlu0 %v1119, 2
        %v1128 = vpop.permute.xlu0 %1127
        %1129 = vrot.lane.b32.xlu0 %v1120, 2
        %v1130 = vpop.permute.xlu0 %1129
        %v1133 = vsub.f32 %v1119, %v1128
        %v1134 = vsub.f32 %v1120, %v1130
        %1137 = vrot.lane.b32.xlu0 %v1121, 2
        %v1138 = vpop.permute.xlu0 %1137
        %1139 = vrot.lane.b32.xlu0 %v1122, 2
        %v1140 = vpop.permute.xlu0 %1139
        %v1143 = vsub.f32 %v1121, %v1138
        %v1144 = vsub.f32 %v1122, %v1140
        %v1145 = vmul.f32 %v1143, 2.0
        %v1146 = vmul.f32 %v1144, 2.0
        %v1147 = vadd.f32 %v1133, %v1145
        %v1148 = vadd.f32 %v1134, %v1146
        %1151 = vrot.lane.b32.xlu0 %v1123, 2
        %v1152 = vpop.permute.xlu0 %1151
        %1153 = vrot.lane.b32.xlu0 %v1124, 2
        %v1154 = vpop.permute.xlu0 %1153
        %v1157 = vsub.f32 %v1123, %v1152
        %v1158 = vsub.f32 %v1124, %v1154
        %v1159 = vadd.f32 %v1147, %v1157
        %v1160 = vadd.f32 %v1148, %v1158
        %v1161 = vmul.f32 %v1119, 2.0
        %v1162 = vmul.f32 %v1120, 2.0
        %1165 = vrot.lane.b32.xlu0 %v1161, 127
        %v1166 = vpop.permute.xlu0 %1165
        %1167 = vrot.lane.b32.xlu0 %v1162, 127
        %v1168 = vpop.permute.xlu0 %1167
        %v1171 = vadd.f32 %v1119, %v1166
        %v1172 = vadd.f32 %v1120, %v1168
        %1173 = vrot.lane.b32.xlu0 %v1119, 126
        %v1174 = vpop.permute.xlu0 %1173
        %1175 = vrot.lane.b32.xlu0 %v1120, 126
        %v1176 = vpop.permute.xlu0 %1175
        %v1179 = vadd.f32 %v1171, %v1174
        %v1180 = vadd.f32 %v1172, %v1176
        %v1181 = vmul.f32 %v1123, 2.0
        %v1182 = vmul.f32 %v1124, 2.0
        %1185 = vrot.lane.b32.xlu0 %v1181, 127
        %v1186 = vpop.permute.xlu0 %1185
        %1187 = vrot.lane.b32.xlu0 %v1182, 127
        %v1188 = vpop.permute.xlu0 %1187
        %v1191 = vadd.f32 %v1123, %v1186
        %v1192 = vadd.f32 %v1124, %v1188
        %1193 = vrot.lane.b32.xlu0 %v1123, 126
        %v1194 = vpop.permute.xlu0 %1193
        %1195 = vrot.lane.b32.xlu0 %v1124, 126
        %v1196 = vpop.permute.xlu0 %1195
        %v1199 = vadd.f32 %v1191, %v1194
        %v1200 = vadd.f32 %v1192, %v1196
        %v1201 = vsub.f32 %v1179, %v1199
        %v1202 = vsub.f32 %v1180, %v1200
        %1205 = vrot.lane.b32.xlu0 %v1000, 1
        %v1206 = vpop.permute.xlu0 %1205
        %1207 = vrot.lane.b32.xlu0 %v1001, 1
        %v1208 = vpop.permute.xlu0 %1207
        %1211 = vst.msk [vmem:[#allocation2 + $0x1] sm:$0xff] %vm372, %v1206
        %1212 = vst.msk [vmem:[#allocation2 + $0x9] sm:$0xff] %vm372, %v1208
        %v1213 = vld [vmem:[#allocation2] sm:$0xff]
        %v1214 = vld [vmem:[#allocation2 + $0x8] sm:$0xff]
        %v1215 = vld [vmem:[#allocation2 + $0x1] sm:$0xff]
        %v1216 = vld [vmem:[#allocation2 + $0x9] sm:$0xff]
        %v1217 = vld [vmem:[#allocation2 + $0x2] sm:$0xff]
        %v1218 = vld [vmem:[#allocation2 + $0xa] sm:$0xff]
        %1221 = vrot.lane.b32.xlu0 %v1213, 2
        %v1222 = vpop.permute.xlu0 %1221
        %1223 = vrot.lane.b32.xlu0 %v1214, 2
        %v1224 = vpop.permute.xlu0 %1223
        %v1227 = vsub.f32 %v1213, %v1222
        %v1228 = vsub.f32 %v1214, %v1224
        %1231 = vrot.lane.b32.xlu0 %v1215, 2
        %v1232 = vpop.permute.xlu0 %1231
        %1233 = vrot.lane.b32.xlu0 %v1216, 2
        %v1234 = vpop.permute.xlu0 %1233
        %v1237 = vsub.f32 %v1215, %v1232
        %v1238 = vsub.f32 %v1216, %v1234
        %v1239 = vmul.f32 %v1237, 2.0
        %v1240 = vmul.f32 %v1238, 2.0
        %v1241 = vadd.f32 %v1227, %v1239
        %v1242 = vadd.f32 %v1228, %v1240
        %1245 = vrot.lane.b32.xlu0 %v1217, 2
        %v1246 = vpop.permute.xlu0 %1245
        %1247 = vrot.lane.b32.xlu0 %v1218, 2
        %v1248 = vpop.permute.xlu0 %1247
        %v1251 = vsub.f32 %v1217, %v1246
        %v1252 = vsub.f32 %v1218, %v1248
        %v1253 = vadd.f32 %v1241, %v1251
        %v1254 = vadd.f32 %v1242, %v1252
        %v1255 = vmul.f32 %v1213, 2.0
        %v1256 = vmul.f32 %v1214, 2.0
        %1259 = vrot.lane.b32.xlu0 %v1255, 127
        %v1260 = vpop.permute.xlu0 %1259
        %1261 = vrot.lane.b32.xlu0 %v1256, 127
        %v1262 = vpop.permute.xlu0 %1261
        %v1265 = vadd.f32 %v1213, %v1260
        %v1266 = vadd.f32 %v1214, %v1262
        %1267 = vrot.lane.b32.xlu0 %v1213, 126
        %v1268 = vpop.permute.xlu0 %1267
        %1269 = vrot.lane.b32.xlu0 %v1214, 126
        %v1270 = vpop.permute.xlu0 %1269
        %v1273 = vadd.f32 %v1265, %v1268
        %v1274 = vadd.f32 %v1266, %v1270
        %v1275 = vmul.f32 %v1217, 2.0
        %v1276 = vmul.f32 %v1218, 2.0
        %1279 = vrot.lane.b32.xlu0 %v1275, 127
        %v1280 = vpop.permute.xlu0 %1279
        %1281 = vrot.lane.b32.xlu0 %v1276, 127
        %v1282 = vpop.permute.xlu0 %1281
        %v1285 = vadd.f32 %v1217, %v1280
        %v1286 = vadd.f32 %v1218, %v1282
        %1287 = vrot.lane.b32.xlu0 %v1217, 126
        %v1288 = vpop.permute.xlu0 %1287
        %1289 = vrot.lane.b32.xlu0 %v1218, 126
        %v1290 = vpop.permute.xlu0 %1289
        %v1293 = vadd.f32 %v1285, %v1288
        %v1294 = vadd.f32 %v1286, %v1290
        %v1295 = vsub.f32 %v1273, %v1293
        %v1296 = vsub.f32 %v1274, %v1294
        %v1297 = vmax.f32 %v1159, %v1253
        %v1298 = vmax.f32 %v1160, %v1254
        %v1299 = vsub.f32 %v1065, %v1297
        %v1300 = vsub.f32 %v1066, %v1298
        %v1301 = vand.u32 2147483647, %v1299
        %v1302 = vand.u32 2147483647, %v1300
        %v1303 = vadd.f32 %v978, %v1301
        %v1304 = vadd.f32 %v979, %v1302
        %v1305 = vmax.f32 %v1201, %v1295
        %v1306 = vmax.f32 %v1202, %v1296
        %v1307 = vsub.f32 %v1107, %v1305
        %v1308 = vsub.f32 %v1108, %v1306
        %v1309 = vand.u32 2147483647, %v1307
        %v1310 = vand.u32 2147483647, %v1308
        %v1311 = vadd.f32 %v986, %v1309
        %v1312 = vadd.f32 %v987, %v1310
        %v1313 = vmul.f32 %v1005, 0.114
        %v1314 = vmul.f32 %v1006, 0.114
        %v1315 = vadd.f32 %v990, %v1313
        %v1316 = vadd.f32 %v991, %v1314
        %v1317 = vmul.f32 %v997, 0.114
        %v1318 = vmul.f32 %v998, 0.114
        %v1319 = vadd.f32 %v994, %v1317
        %v1320 = vadd.f32 %v995, %v1318
        %v1321 = vsub.f32 %v354, %v1315
        %v1322 = vsub.f32 %v355, %v1316
        %v1323 = vmul.f32 %v1321, 0.713
        %v1324 = vmul.f32 %v1322, 0.713
        %v1325 = vadd.f32 %v1323, 0.5
        %v1326 = vadd.f32 %v1324, 0.5
        %v1327 = vsub.f32 %v348, %v1319
        %v1328 = vsub.f32 %v349, %v1320
        %v1329 = vmul.f32 %v1327, 0.713
        %v1330 = vmul.f32 %v1328, 0.713
        %v1331 = vadd.f32 %v1329, 0.5
        %v1332 = vadd.f32 %v1330, 0.5
        %v1333 = vsub.f32 %v1005, %v1315
        %v1334 = vsub.f32 %v1006, %v1316
        %v1335 = vmul.f32 %v1333, 0.564
        %v1336 = vmul.f32 %v1334, 0.564
        %v1337 = vadd.f32 %v1335, 0.5
        %v1338 = vadd.f32 %v1336, 0.5
        %v1339 = vsub.f32 %v997, %v1319
        %v1340 = vsub.f32 %v998, %v1320
        %v1341 = vmul.f32 %v1339, 0.564
        %v1342 = vmul.f32 %v1340, 0.564
        %v1343 = vadd.f32 %v1341, 0.5
        %v1344 = vadd.f32 %v1342, 0.5
        %v1345 = vsub.f32 %v1325, %v1331
        %v1346 = vsub.f32 %v1326, %v1332
        %v1347 = vand.u32 2147483647, %v1345
        %v1348 = vand.u32 2147483647, %v1346
        %v1349 = vsub.f32 %v1337, %v1343
        %v1350 = vsub.f32 %v1338, %v1344
        %v1351 = vand.u32 2147483647, %v1349
        %v1352 = vand.u32 2147483647, %v1350
        %vm1353 = vcmask 130048
        %v1354 = vsel %vm1353, %v1013, 0.0
        %v1355 = vsel %vm1353, %v1014, 0.0
        %v1356 = vadd.f32 %v1354, %v1355
        %1357 = vadd.xlane.f32.xlu0 %v1356
        %v1358 = vpop.xlane.xlu0 %1357
        %v1359 = vrot.slane %v1358, 4
        %v1360 = vadd.f32 %v1358, %v1359
        %v1361 = vrot.slane %v1360, 2
        %v1362 = vadd.f32 %v1360, %v1361
        %v1363 = vrot.slane %v1362, 1
        %v1364 = vadd.f32 %v1362, %v1363
        %s1365 = vtos %v1364
        %1368 = vrot.lane.b32.xlu0 %v1303, 126
        %v1369 = vpop.permute.xlu0 %1368
        %1370 = vrot.lane.b32.xlu0 %v1304, 126
        %v1371 = vpop.permute.xlu0 %1370
        %v1374 = vsel %vm1353, %v1369, 0.0
        %v1375 = vsel %vm1353, %v1371, 0.0
        %v1376 = vadd.f32 %v1374, %v1375
        %1377 = vadd.xlane.f32.xlu0 %v1376
        %v1378 = vpop.xlane.xlu0 %1377
        %v1379 = vrot.slane %v1378, 4
        %v1380 = vadd.f32 %v1378, %v1379
        %v1381 = vrot.slane %v1380, 2
        %v1382 = vadd.f32 %v1380, %v1381
        %v1383 = vrot.slane %v1382, 1
        %v1384 = vadd.f32 %v1382, %v1383
        %s1385 = vtos %v1384
        %v1386 = vsel %vm1353, %v1311, 0.0
        %v1387 = vsel %vm1353, %v1312, 0.0
        %v1388 = vadd.f32 %v1386, %v1387
        %1389 = vadd.xlane.f32.xlu0 %v1388
        %v1390 = vpop.xlane.xlu0 %1389
        %v1391 = vrot.slane %v1390, 4
        %v1392 = vadd.f32 %v1390, %v1391
        %v1393 = vrot.slane %v1392, 2
        %v1394 = vadd.f32 %v1392, %v1393
        %v1395 = vrot.slane %v1394, 1
        %v1396 = vadd.f32 %v1394, %v1395
        %s1397 = vtos %v1396
        %v1398 = vsel %vm1353, %v1347, 0.0
        %v1399 = vsel %vm1353, %v1348, 0.0
        %v1400 = vadd.f32 %v1398, %v1399
        %1401 = vadd.xlane.f32.xlu0 %v1400
        %v1402 = vpop.xlane.xlu0 %1401
        %v1403 = vrot.slane %v1402, 4
        %v1404 = vadd.f32 %v1402, %v1403
        %v1405 = vrot.slane %v1404, 2
        %v1406 = vadd.f32 %v1404, %v1405
        %v1407 = vrot.slane %v1406, 1
        %v1408 = vadd.f32 %v1406, %v1407
        %s1409 = vtos %v1408
        %v1410 = vsel %vm1353, %v1351, 0.0
        %v1411 = vsel %vm1353, %v1352, 0.0
        %v1412 = vadd.f32 %v1410, %v1411
        %1413 = vadd.xlane.f32.xlu0 %v1412
        %v1414 = vpop.xlane.xlu0 %1413
        %v1415 = vrot.slane %v1414, 4
        %v1416 = vadd.f32 %v1414, %v1415
        %v1417 = vrot.slane %v1416, 2
        %v1418 = vadd.f32 %v1416, %v1417
        %v1419 = vrot.slane %v1418, 1
        %v1420 = vadd.f32 %v1418, %v1419
        %s1421 = vtos %v1420
        %v1422 = vlaneseq
        %v1423 = vand.u32 %v1422, 127
        %vm1424 = vcmp.eq.s32.totalorder %v1423, 0
        %v1425 = vstv %s1365
        %v1426 = vsel %vm1424, %v1425, 0.0
        %vm1427 = vcmp.eq.s32.totalorder %v1423, 1
        %v1428 = vstv %s1385
        %v1429 = vsel %vm1427, %v1428, 0.0
        %v1430 = vadd.f32 %v1426, %v1429
        %vm1431 = vcmp.eq.s32.totalorder %v1423, 2
        %v1432 = vstv %s1397
        %v1433 = vsel %vm1431, %v1432, 0.0
        %v1434 = vadd.f32 %v1430, %v1433
        %vm1435 = vcmp.eq.s32.totalorder %v1423, 3
        %v1436 = vstv %s1409
        %v1437 = vsel %vm1435, %v1436, 0.0
        %v1438 = vadd.f32 %v1434, %v1437
        %vm1439 = vcmp.eq.s32.totalorder %v1423, 4
        %v1440 = vstv %s1421
        %v1441 = vsel %vm1439, %v1440, 0.0
        %v1442 = vadd.f32 %v1438, %v1441
        %1443 = vst [vmem:[%s340] sm:$0xff] %v1442
        %s1444 = sand.u32 %s139, 1
        %s1445 = scalar_lea.sflag [#allocation5], %s1444
        %s1446 = sand.u32 %s139, 1
        %s1447 = smul.addr %s1446, 8
        %s1448 = scalar_lea.vmem [#allocation11], %s1447
        // Predicated region
        $region53: #{tpu_custom_call.1} parent=35 // pred_check
          %p1449 = pneg %p149
        $region54: #{tpu_custom_call.1} parent=35 // pred_check_branch
          %1451 = sbr.rel (%p1449) target = $region56
        $region55: #{tpu_custom_call.1} parent=35 // pred_region
          %1453 = vsyncadd %s1445, 0
          %s1454 = smul.addr %s27, 8
          %s1455 = scalar_lea.hbm %s4, %s1454
          %s1457 = sshll.u32 %s1448, 4
          %s1458 = int_to_ptr.vmem [resolvable:$true] %s1457
          %s1459 = sshll.u32 %s1455, 4
          %s1460 = int_to_ptr.hbm [resolvable:$true] %s1459
          %1462 = dma.vmem_to_hbm [thread:$0]  %s1458, 128, %s1460, %s1445
        $region56: #{tpu_custom_call.1} parent=35 // pred_fallthru
          _
      $region36: #{tpu_custom_call.1} parent=5 // pred_fallthru
        _
      %p1463 = scmp.le.s32.totalorder 2, %s22
      // Predicated region
      $region57: #{tpu_custom_call.1} parent=5 // pred_check
        %p1464 = pneg %p1463
      $region58: #{tpu_custom_call.1} parent=5 // pred_check_branch
        %1466 = sbr.rel (%p1464) target = $region60
      $region59: #{tpu_custom_call.1} parent=5 // pred_region
        %s1467 = ssub.s32 %s22, 2
        // Predicated region
        $region61: #{tpu_custom_call.1} parent=59 // pred_check
          %p1468 = pneg %p155
        $region62: #{tpu_custom_call.1} parent=59 // pred_check_branch
          %1470 = sbr.rel (%p1468) target = $region64
        $region63: #{tpu_custom_call.1} parent=59 // pred_region
          %s1471 = sand.u32 %s140, 1
          %s1472 = scalar_lea.sflag [#allocation5], %s1471
          %s1473 = sand.u32 %s140, 1
          %s1474 = smul.addr %s1473, 8
          %s1475 = scalar_lea.vmem [#allocation11], %s1474
          %1477 = dma.done %s1472, 128
        $region64: #{tpu_custom_call.1} parent=59 // pred_fallthru
          _
      $region60: #{tpu_custom_call.1} parent=5 // pred_fallthru
        _
    $region6: #{tpu_custom_call.1} parent=1 // loop_footer
      %s26 = sadd.s32 1, %s22
    $region7: #{tpu_custom_call.1} parent=1 // loop_footer_branch
      %21 = sbr.rel target = $region3
    $region8: #{tpu_custom_call.1} parent=1 // loop_exit
      _
    %1478 = vsyncpa [#allocation4], 1
    %s1479 = scalar_lea.sflag [#allocation4], 1
    %1480 = vsyncpa %s1479, 1
    %1481 = vsyncpa [#allocation7], 1
    %s1482 = scalar_lea.sflag [#allocation7], 1
    %1483 = vsyncpa %s1482, 1
    %1484 = vsyncpa [#allocation10], 1
    %s1485 = scalar_lea.sflag [#allocation10], 1
    %1486 = vsyncpa %s1485, 1
    %1487 = vsyncpa [#allocation5], 1
    %s1488 = scalar_lea.sflag [#allocation5], 1
    %1489 = vsyncpa %s1488, 1

</llo_original>
